<compile_context>
chip_gen: v6e
topology: v6e:2x2x1
jax: 0.10.0
libtpu: 0.0.40
codegen_flags: <defaults>
</compile_context>

<pallas_src>
import math

import jax
import jax.numpy as jnp
from jax import lax
from jax.experimental import pallas as pl
from jax.experimental.pallas import tpu as pltpu  # noqa: F401  (TPU backend)

# ----------------------- small config (Qwen2_5MoEConfig-like) -----------------
B, S, H = 2, 8, 32
NUM_HEADS = 4
HEAD_DIM = H // NUM_HEADS          # 8
HALF = HEAD_DIM // 2               # 4
INTERMEDIATE = 64
NUM_EXPERTS = 3
TOP_K = 1                          # config default -> normalized top-1 prob == 1.0
RMS_EPS = 1e-6
ROPE_THETA = 10000.0
T = B * S                          # 16 tokens
TH = T * NUM_HEADS                 # 64 rows in the head-stacked attention layout
EI = NUM_EXPERTS * INTERMEDIATE    # 192
NEG_INF = -1e30


# ----------------------------- fused decoder-layer kernel ---------------------
def _decoder_layer_kernel(x_ref, ln1_ref, ln2_ref,
                          wqkv_ref, bqkv_ref, wo_ref,
                          cos_ref, sin_ref, mask_ref,
                          wr_ref, wgu_ref, wd_ref, slab_eid_ref,
                          out_ref, aux_ref):
    f32 = jnp.float32
    bf16 = jnp.bfloat16

    x = x_ref[...]                                            # (T, H) f32, residual #1

    # ---------------- input RMSNorm (f32, VPU) ----------------
    var = jnp.mean(x * x, axis=-1, keepdims=True)
    xb = ((x * lax.rsqrt(var + RMS_EPS)) * ln1_ref[...]).astype(bf16)

    # ---------------- fused QKV projection: one MXU matmul ----------------
    # (1/sqrt(head_dim) softmax scale is pre-folded into the q columns of wqkv/bqkv)
    qkv = jnp.dot(xb, wqkv_ref[...], preferred_element_type=f32) + bqkv_ref[...]  # (T, 3H)

    # ---------------- head-stacked 2-D layout: row = head*T + token ----------------
    def hstack(base):  # 4 lane slices of one 32-wide slab, stacked along sublanes
        return [qkv[:, base + h * HEAD_DIM: base + (h + 1) * HEAD_DIM]
                for h in range(NUM_HEADS)]

    qk2 = jnp.concatenate(hstack(0) + hstack(H), axis=0)       # (2*TH, HD) q rows then k rows
    v2 = jnp.concatenate(hstack(2 * H), axis=0).astype(bf16)   # (TH, HD)

    # ---------------- RoPE on q and k together ----------------
    # rotate_half = half swap; the sign is folded into the host-built sin table.
    rot = jnp.concatenate([qk2[:, HALF:], qk2[:, :HALF]], axis=-1)
    qk2 = (qk2 * cos_ref[...] + rot * sin_ref[...]).astype(bf16)
    q2 = qk2[:TH]                                              # (TH, HD) bf16
    k2 = qk2[TH:]                                              # (TH, HD) bf16

    # ---------------- attention: 2 matmuls total over all heads ----------------
    # mask is block-diagonal in heads and causal/batch-block in tokens.
    s = jnp.einsum('td,sd->ts', q2, k2, preferred_element_type=f32) + mask_ref[...]
    s = s - jnp.max(s, axis=-1, keepdims=True)
    p = jnp.exp(s)
    p = p * pl.reciprocal(jnp.sum(p, axis=-1, keepdims=True), approx=True)
    ctx = jnp.dot(p.astype(bf16), v2, preferred_element_type=f32)          # (TH, HD)
    ctx = jnp.concatenate([ctx[h * T:(h + 1) * T, :] for h in range(NUM_HEADS)],
                          axis=-1).astype(bf16)                            # (T, H)

    attn = jnp.dot(ctx, wo_ref[...], preferred_element_type=f32)           # (T, H)
    h1 = attn + x                                                          # residual #1

    # ---------------- post-attention RMSNorm (f32) ----------------
    var2 = jnp.mean(h1 * h1, axis=-1, keepdims=True)
    xn2 = (h1 * lax.rsqrt(var2 + RMS_EPS)) * ln2_ref[...]
    xn2b = xn2.astype(bf16)

    # ---------------- router (bf16 MXU, f32 softmax) ----------------
    logits = jnp.dot(xn2b, wr_ref[...], preferred_element_type=f32)        # (T, E)
    logits = logits - jnp.max(logits, axis=-1, keepdims=True)
    ex = jnp.exp(logits)
    probs = ex * pl.reciprocal(jnp.sum(ex, axis=-1, keepdims=True), approx=True)

    # aux loss exactly as in the reference module: mean(E * mean_t(probs)^2)
    mp = jnp.mean(probs, axis=0, keepdims=True)                            # (1, E)
    aux_ref[...] = jnp.mean(NUM_EXPERTS * mp * mp, keepdims=True)          # (1, 1)

    # top-1 dispatch: argmax expert (lowest index wins ties), normalized weight == 1.0
    eidx = lax.broadcasted_iota(jnp.int32, (T, NUM_EXPERTS), 1).astype(f32)
    mx = jnp.max(probs, axis=-1, keepdims=True)
    sel = jnp.min(jnp.where(probs >= mx, eidx, float(NUM_EXPERTS)),
                  axis=-1, keepdims=True)                                  # (T, 1) f32

    # ---------------- fused MoE: one gate+up matmul, VPU dispatch, one down matmul ----
    gu = jnp.dot(xn2b, wgu_ref[...], preferred_element_type=f32)           # (T, 2*E*I)
    g = gu[:, :EI]
    u = gu[:, EI:]
    hdn = (g * jax.nn.sigmoid(g)) * u                                      # SiLU(gate)*up, f32
    hdn = jnp.where(slab_eid_ref[...] == sel, hdn, 0.0)                    # top-1 dispatch mask
    moe = jnp.dot(hdn.astype(bf16), wd_ref[...], preferred_element_type=f32)  # (T, H)

    out_ref[...] = moe + h1                                                # residual #2, 1 store


# ----------------------------- host wrapper ------------------------------------
def decoder_layer(params, hidden_states):
    x_tok = hidden_states.reshape(T, H)
    out_tok, aux = pl.pallas_call(
        _decoder_layer_kernel,
        out_shape=(jax.ShapeDtypeStruct((T, H), jnp.float32),
                   jax.ShapeDtypeStruct((1, 1), jnp.float32)),
    )(x_tok,
      params["ln1_w"], params["ln2_w"],
      params["wqkv"], params["bqkv"], params["wo"],
      params["cos_qk"], params["sin_qk"], params["mask"],
      params["wr"], params["wgu"], params["wd_cat"], params["slab_eid"])
    return out_tok.reshape(B, S, H), aux[0, 0]


# ----------------------------- parameter init ------------------------------------
def init_params(key):
    ks = jax.random.split(key, 12)
    std = 0.02

    def nrm(k, shape, scale=std):
        return jax.random.normal(k, shape, jnp.float32) * scale

    wq = nrm(ks[0], (H, H)); bq = nrm(ks[1], (1, H))
    wk = nrm(ks[2], (H, H)); bk = nrm(ks[3], (1, H))
    wv = nrm(ks[4], (H, H)); bv = nrm(ks[5], (1, H))
    wo = nrm(ks[6], (H, H))
    wr = nrm(ks[7], (H, NUM_EXPERTS), 0.01)
    wg = nrm(ks[8], (NUM_EXPERTS, H, INTERMEDIATE))
    wu = nrm(ks[9], (NUM_EXPERTS, H, INTERMEDIATE))
    wd = nrm(ks[10], (NUM_EXPERTS, INTERMEDIATE, H))

    # fused QKV with the softmax scale folded into the q columns / bias
    scale = 1.0 / math.sqrt(HEAD_DIM)
    wqkv = jnp.concatenate([wq * scale, wk, wv], axis=1)                   # (H, 3H)
    bqkv = jnp.concatenate([bq * scale, bk, bv], axis=1)                   # (1, 3H)

    # fused gate+up (expert-major column blocks) and stacked down projection
    wg_cat = jnp.transpose(wg, (1, 0, 2)).reshape(H, EI)
    wu_cat = jnp.transpose(wu, (1, 0, 2)).reshape(H, EI)
    wgu = jnp.concatenate([wg_cat, wu_cat], axis=1)                        # (H, 2*E*I)

    p = {
        "ln1_w": jnp.ones((1, H), jnp.float32),
        "ln2_w": jnp.ones((1, H), jnp.float32),
        "wqkv": wqkv.astype(jnp.bfloat16),
        "bqkv": bqkv,
        "wo": wo.astype(jnp.bfloat16),
        "wr": wr.astype(jnp.bfloat16),
        "wgu": wgu.astype(jnp.bfloat16),
        "wd_cat": wd.reshape(EI, H).astype(jnp.bfloat16),                  # (E*I, H)
        # per-lane expert id for the (T, E*I) hidden slab (VPU dispatch mask)
        "slab_eid": jnp.repeat(jnp.arange(NUM_EXPERTS, dtype=jnp.float32),
                               INTERMEDIATE)[None, :],                     # (1, E*I)
    }

    # RoPE tables for the head-stacked (q ++ k) layout: row = part*TH + head*T + token
    pos = jnp.arange(S, dtype=jnp.float32)
    inv_freq = 1.0 / (ROPE_THETA ** (jnp.arange(0, HEAD_DIM, 2, dtype=jnp.float32)
                                     / HEAD_DIM))
    freqs = pos[:, None] * inv_freq[None, :]                               # (S, HD/2)
    cos_emb = jnp.cos(jnp.concatenate([freqs, freqs], axis=-1))            # (S, HD)
    sin_half = jnp.sin(freqs)
    sin_signed = jnp.concatenate([-sin_half, sin_half], axis=-1)           # rotate sign folded in
    row_pos = (jnp.arange(2 * TH) % T) % S                                 # position of each row
    p["cos_qk"] = cos_emb[row_pos]                                         # (2*TH, HD)
    p["sin_qk"] = sin_signed[row_pos]                                      # (2*TH, HD)

    # Additive attention bias over the head-stacked (TH, TH) score matrix:
    # same head AND same batch block AND causal.
    r = jnp.arange(TH)
    h_id = r // T
    t_id = r % T
    ok = ((h_id[:, None] == h_id[None, :])
          & ((t_id[:, None] // S) == (t_id[None, :] // S))
          & (t_id[:, None] >= t_id[None, :]))
    p["mask"] = jnp.where(ok, 0.0, NEG_INF).astype(jnp.float32)            # (TH, TH)
    return p


if __name__ == "__main__":
    key = jax.random.PRNGKey(0)
    pkey, xkey = jax.random.split(key)
    params = init_params(pkey)
    hidden_states = jax.random.normal(xkey, (B, S, H), jnp.float32)

    out, aux_loss = jax.jit(decoder_layer)(params, hidden_states)
    jax.block_until_ready((out, aux_loss))

    assert out.shape == (B, S, H)
    assert bool(jnp.isfinite(out).all()) and bool(jnp.isfinite(aux_loss))
    print("KERNEL_OK")
</pallas_src>

<mosaic_0001>
module attributes {stable_mosaic.version = 11 : i64} {
  func.func @_decoder_layer_kernel(%arg0: memref<16x32xf32, #tpu.memory_space<vmem>>, %arg1: memref<1x32xf32, #tpu.memory_space<vmem>>, %arg2: memref<1x32xf32, #tpu.memory_space<vmem>>, %arg3: memref<32x96xbf16, #tpu.memory_space<vmem>>, %arg4: memref<1x96xf32, #tpu.memory_space<vmem>>, %arg5: memref<32x32xbf16, #tpu.memory_space<vmem>>, %arg6: memref<128x8xf32, #tpu.memory_space<vmem>>, %arg7: memref<128x8xf32, #tpu.memory_space<vmem>>, %arg8: memref<64x64xf32, #tpu.memory_space<vmem>>, %arg9: memref<32x3xbf16, #tpu.memory_space<vmem>>, %arg10: memref<32x384xbf16, #tpu.memory_space<vmem>>, %arg11: memref<192x32xbf16, #tpu.memory_space<vmem>>, %arg12: memref<1x192xf32, #tpu.memory_space<vmem>>, %arg13: memref<16x32xf32, #tpu.memory_space<vmem>>, %arg14: memref<1x1xf32, #tpu.memory_space<vmem>>) attributes {dimension_semantics = [], scalar_prefetch = 0 : i64, scratch_operands = 0 : i64, tpu.core_type = #tpu.core_type<tc>} {
    %c0 = arith.constant 0 : index
    %c0_0 = arith.constant 0 : index
    %0 = vector.load %arg0[%c0, %c0_0] : memref<16x32xf32, #tpu.memory_space<vmem>>, vector<16x32xf32>
    %1 = arith.mulf %0, %0 : vector<16x32xf32>
    %cst = arith.constant dense<0.000000e+00> : vector<16xf32>
    %2 = vector.multi_reduction <add>, %1, %cst [1] : vector<16x32xf32> to vector<16xf32>
    %3 = vector.shape_cast %2 : vector<16xf32> to vector<16x1xf32>
    %cst_1 = arith.constant 3.200000e+01 : f32
    %4 = vector.broadcast %cst_1 : f32 to vector<16x1xf32>
    %5 = arith.divf %3, %4 : vector<16x1xf32>
    %cst_2 = arith.constant 9.99999997E-7 : f32
    %6 = vector.broadcast %cst_2 : f32 to vector<16x1xf32>
    %7 = arith.addf %5, %6 : vector<16x1xf32>
    %8 = math.rsqrt %7 : vector<16x1xf32>
    %9 = vector.broadcast %8 : vector<16x1xf32> to vector<16x32xf32>
    %10 = arith.mulf %0, %9 : vector<16x32xf32>
    %c0_3 = arith.constant 0 : index
    %c0_4 = arith.constant 0 : index
    %11 = vector.load %arg1[%c0_3, %c0_4] : memref<1x32xf32, #tpu.memory_space<vmem>>, vector<1x32xf32>
    %12 = vector.broadcast %11 : vector<1x32xf32> to vector<16x32xf32>
    %13 = arith.mulf %10, %12 : vector<16x32xf32>
    %14 = arith.truncf %13 : vector<16x32xf32> to vector<16x32xbf16>
    %c0_5 = arith.constant 0 : index
    %c0_6 = arith.constant 0 : index
    %15 = vector.load %arg3[%c0_5, %c0_6] : memref<32x96xbf16, #tpu.memory_space<vmem>>, vector<32x96xbf16>
    %cst_7 = arith.constant dense<0.000000e+00> : vector<16x96xf32>
    %16 = tpu.matmul %14, %15, %cst_7 {dimension_numbers = #tpu.dot_dimension_numbers<[1], [0], [0], [1], [0, 0, 1, 1], [], []>} : vector<16x32xbf16>, vector<32x96xbf16>, vector<16x96xf32> -> vector<16x96xf32>
    %c0_8 = arith.constant 0 : index
    %c0_9 = arith.constant 0 : index
    %17 = vector.load %arg4[%c0_8, %c0_9] : memref<1x96xf32, #tpu.memory_space<vmem>>, vector<1x96xf32>
    %18 = vector.broadcast %17 : vector<1x96xf32> to vector<16x96xf32>
    %19 = arith.addf %16, %18 : vector<16x96xf32>
    %20 = vector.extract_strided_slice %19 {offsets = [0, 0], sizes = [16, 8], strides = [1, 1]} : vector<16x96xf32> to vector<16x8xf32>
    %21 = vector.extract_strided_slice %19 {offsets = [0, 8], sizes = [16, 8], strides = [1, 1]} : vector<16x96xf32> to vector<16x8xf32>
    %22 = vector.extract_strided_slice %19 {offsets = [0, 16], sizes = [16, 8], strides = [1, 1]} : vector<16x96xf32> to vector<16x8xf32>
    %23 = vector.extract_strided_slice %19 {offsets = [0, 24], sizes = [16, 8], strides = [1, 1]} : vector<16x96xf32> to vector<16x8xf32>
    %24 = vector.extract_strided_slice %19 {offsets = [0, 32], sizes = [16, 8], strides = [1, 1]} : vector<16x96xf32> to vector<16x8xf32>
    %25 = vector.extract_strided_slice %19 {offsets = [0, 40], sizes = [16, 8], strides = [1, 1]} : vector<16x96xf32> to vector<16x8xf32>
    %26 = vector.extract_strided_slice %19 {offsets = [0, 48], sizes = [16, 8], strides = [1, 1]} : vector<16x96xf32> to vector<16x8xf32>
    %27 = vector.extract_strided_slice %19 {offsets = [0, 56], sizes = [16, 8], strides = [1, 1]} : vector<16x96xf32> to vector<16x8xf32>
    %28 = tpu.concatenate %20, %21, %22, %23, %24, %25, %26, %27 in 0 : vector<16x8xf32>, vector<16x8xf32>, vector<16x8xf32>, vector<16x8xf32>, vector<16x8xf32>, vector<16x8xf32>, vector<16x8xf32>, vector<16x8xf32> -> vector<128x8xf32>
    %29 = vector.extract_strided_slice %19 {offsets = [0, 64], sizes = [16, 8], strides = [1, 1]} : vector<16x96xf32> to vector<16x8xf32>
    %30 = vector.extract_strided_slice %19 {offsets = [0, 72], sizes = [16, 8], strides = [1, 1]} : vector<16x96xf32> to vector<16x8xf32>
    %31 = vector.extract_strided_slice %19 {offsets = [0, 80], sizes = [16, 8], strides = [1, 1]} : vector<16x96xf32> to vector<16x8xf32>
    %32 = vector.extract_strided_slice %19 {offsets = [0, 88], sizes = [16, 8], strides = [1, 1]} : vector<16x96xf32> to vector<16x8xf32>
    %33 = tpu.concatenate %29, %30, %31, %32 in 0 : vector<16x8xf32>, vector<16x8xf32>, vector<16x8xf32>, vector<16x8xf32> -> vector<64x8xf32>
    %34 = arith.truncf %33 : vector<64x8xf32> to vector<64x8xbf16>
    %35 = vector.extract_strided_slice %28 {offsets = [0, 4], sizes = [128, 4], strides = [1, 1]} : vector<128x8xf32> to vector<128x4xf32>
    %36 = vector.extract_strided_slice %28 {offsets = [0, 0], sizes = [128, 4], strides = [1, 1]} : vector<128x8xf32> to vector<128x4xf32>
    %37 = tpu.concatenate %35, %36 in 1 : vector<128x4xf32>, vector<128x4xf32> -> vector<128x8xf32>
    %c0_10 = arith.constant 0 : index
    %c0_11 = arith.constant 0 : index
    %38 = vector.load %arg6[%c0_10, %c0_11] : memref<128x8xf32, #tpu.memory_space<vmem>>, vector<128x8xf32>
    %39 = arith.mulf %28, %38 : vector<128x8xf32>
    %c0_12 = arith.constant 0 : index
    %c0_13 = arith.constant 0 : index
    %40 = vector.load %arg7[%c0_12, %c0_13] : memref<128x8xf32, #tpu.memory_space<vmem>>, vector<128x8xf32>
    %41 = arith.mulf %37, %40 : vector<128x8xf32>
    %42 = arith.addf %39, %41 : vector<128x8xf32>
    %43 = arith.truncf %42 : vector<128x8xf32> to vector<128x8xbf16>
    %44 = vector.extract_strided_slice %43 {offsets = [0, 0], sizes = [64, 8], strides = [1, 1]} : vector<128x8xbf16> to vector<64x8xbf16>
    %45 = vector.extract_strided_slice %43 {offsets = [64, 0], sizes = [64, 8], strides = [1, 1]} : vector<128x8xbf16> to vector<64x8xbf16>
    "tpu.trace_start"() <{level = 10 : i32, message = "td,sd->ts"}> : () -> ()
    %cst_14 = arith.constant dense<0.000000e+00> : vector<64x64xf32>
    %46 = tpu.matmul %44, %45, %cst_14 {dimension_numbers = #tpu.dot_dimension_numbers<[1], [1], [0], [0], [0, 0, 1, 0], [], []>} : vector<64x8xbf16>, vector<64x8xbf16>, vector<64x64xf32> -> vector<64x64xf32>
    "tpu.trace_stop"() : () -> ()
    %c0_15 = arith.constant 0 : index
    %c0_16 = arith.constant 0 : index
    %47 = vector.load %arg8[%c0_15, %c0_16] : memref<64x64xf32, #tpu.memory_space<vmem>>, vector<64x64xf32>
    %48 = arith.addf %46, %47 : vector<64x64xf32>
    %cst_17 = arith.constant dense<0xFF800000> : vector<64xf32>
    %49 = vector.multi_reduction <maximumf>, %48, %cst_17 [1] : vector<64x64xf32> to vector<64xf32>
    %50 = vector.shape_cast %49 : vector<64xf32> to vector<64x1xf32>
    %51 = vector.broadcast %50 : vector<64x1xf32> to vector<64x64xf32>
    %52 = arith.subf %48, %51 : vector<64x64xf32>
    %53 = math.exp %52 : vector<64x64xf32>
    %cst_18 = arith.constant dense<0.000000e+00> : vector<64xf32>
    %54 = vector.multi_reduction <add>, %53, %cst_18 [1] : vector<64x64xf32> to vector<64xf32>
    %55 = vector.shape_cast %54 : vector<64xf32> to vector<64x1xf32>
    %56 = tpu.reciprocal %55 {approx = true} : vector<64x1xf32> -> vector<64x1xf32>
    %57 = vector.broadcast %56 : vector<64x1xf32> to vector<64x64xf32>
    %58 = arith.mulf %53, %57 : vector<64x64xf32>
    %59 = arith.truncf %58 : vector<64x64xf32> to vector<64x64xbf16>
    %cst_19 = arith.constant dense<0.000000e+00> : vector<64x8xf32>
    %60 = tpu.matmul %59, %34, %cst_19 {dimension_numbers = #tpu.dot_dimension_numbers<[1], [0], [0], [1], [0, 0, 1, 1], [], []>} : vector<64x64xbf16>, vector<64x8xbf16>, vector<64x8xf32> -> vector<64x8xf32>
    %61 = vector.extract_strided_slice %60 {offsets = [0, 0], sizes = [16, 8], strides = [1, 1]} : vector<64x8xf32> to vector<16x8xf32>
    %62 = vector.extract_strided_slice %60 {offsets = [16, 0], sizes = [16, 8], strides = [1, 1]} : vector<64x8xf32> to vector<16x8xf32>
    %63 = vector.extract_strided_slice %60 {offsets = [32, 0], sizes = [16, 8], strides = [1, 1]} : vector<64x8xf32> to vector<16x8xf32>
    %64 = vector.extract_strided_slice %60 {offsets = [48, 0], sizes = [16, 8], strides = [1, 1]} : vector<64x8xf32> to vector<16x8xf32>
    %65 = tpu.concatenate %61, %62, %63, %64 in 1 : vector<16x8xf32>, vector<16x8xf32>, vector<16x8xf32>, vector<16x8xf32> -> vector<16x32xf32>
    %66 = arith.truncf %65 : vector<16x32xf32> to vector<16x32xbf16>
    %c0_20 = arith.constant 0 : index
    %c0_21 = arith.constant 0 : index
    %67 = vector.load %arg5[%c0_20, %c0_21] : memref<32x32xbf16, #tpu.memory_space<vmem>>, vector<32x32xbf16>
    %cst_22 = arith.constant dense<0.000000e+00> : vector<16x32xf32>
    %68 = tpu.matmul %66, %67, %cst_22 {dimension_numbers = #tpu.dot_dimension_numbers<[1], [0], [0], [1], [0, 0, 1, 1], [], []>} : vector<16x32xbf16>, vector<32x32xbf16>, vector<16x32xf32> -> vector<16x32xf32>
    %69 = arith.addf %68, %0 : vector<16x32xf32>
    %70 = arith.mulf %69, %69 : vector<16x32xf32>
    %cst_23 = arith.constant dense<0.000000e+00> : vector<16xf32>
    %71 = vector.multi_reduction <add>, %70, %cst_23 [1] : vector<16x32xf32> to vector<16xf32>
    %72 = vector.shape_cast %71 : vector<16xf32> to vector<16x1xf32>
    %cst_24 = arith.constant 3.200000e+01 : f32
    %73 = vector.broadcast %cst_24 : f32 to vector<16x1xf32>
    %74 = arith.divf %72, %73 : vector<16x1xf32>
    %cst_25 = arith.constant 9.99999997E-7 : f32
    %75 = vector.broadcast %cst_25 : f32 to vector<16x1xf32>
    %76 = arith.addf %74, %75 : vector<16x1xf32>
    %77 = math.rsqrt %76 : vector<16x1xf32>
    %78 = vector.broadcast %77 : vector<16x1xf32> to vector<16x32xf32>
    %79 = arith.mulf %69, %78 : vector<16x32xf32>
    %c0_26 = arith.constant 0 : index
    %c0_27 = arith.constant 0 : index
    %80 = vector.load %arg2[%c0_26, %c0_27] : memref<1x32xf32, #tpu.memory_space<vmem>>, vector<1x32xf32>
    %81 = vector.broadcast %80 : vector<1x32xf32> to vector<16x32xf32>
    %82 = arith.mulf %79, %81 : vector<16x32xf32>
    %83 = arith.truncf %82 : vector<16x32xf32> to vector<16x32xbf16>
    %c0_28 = arith.constant 0 : index
    %c0_29 = arith.constant 0 : index
    %84 = vector.load %arg9[%c0_28, %c0_29] : memref<32x3xbf16, #tpu.memory_space<vmem>>, vector<32x3xbf16>
    %cst_30 = arith.constant dense<0.000000e+00> : vector<16x3xf32>
    %85 = tpu.matmul %83, %84, %cst_30 {dimension_numbers = #tpu.dot_dimension_numbers<[1], [0], [0], [1], [0, 0, 1, 1], [], []>} : vector<16x32xbf16>, vector<32x3xbf16>, vector<16x3xf32> -> vector<16x3xf32>
    %cst_31 = arith.constant dense<0xFF800000> : vector<16xf32>
    %86 = vector.multi_reduction <maximumf>, %85, %cst_31 [1] : vector<16x3xf32> to vector<16xf32>
    %87 = vector.shape_cast %86 : vector<16xf32> to vector<16x1xf32>
    %88 = vector.broadcast %87 : vector<16x1xf32> to vector<16x3xf32>
    %89 = arith.subf %85, %88 : vector<16x3xf32>
    %90 = math.exp %89 : vector<16x3xf32>
    %cst_32 = arith.constant dense<0.000000e+00> : vector<16xf32>
    %91 = vector.multi_reduction <add>, %90, %cst_32 [1] : vector<16x3xf32> to vector<16xf32>
    %92 = vector.shape_cast %91 : vector<16xf32> to vector<16x1xf32>
    %93 = tpu.reciprocal %92 {approx = true} : vector<16x1xf32> -> vector<16x1xf32>
    %94 = vector.broadcast %93 : vector<16x1xf32> to vector<16x3xf32>
    %95 = arith.mulf %90, %94 : vector<16x3xf32>
    %cst_33 = arith.constant dense<0.000000e+00> : vector<3xf32>
    %96 = vector.multi_reduction <add>, %95, %cst_33 [0] : vector<16x3xf32> to vector<3xf32>
    %97 = vector.shape_cast %96 : vector<3xf32> to vector<1x3xf32>
    %cst_34 = arith.constant 1.600000e+01 : f32
    %98 = vector.broadcast %cst_34 : f32 to vector<1x3xf32>
    %99 = arith.divf %97, %98 : vector<1x3xf32>
    %cst_35 = arith.constant 3.000000e+00 : f32
    %100 = vector.broadcast %cst_35 : f32 to vector<1x3xf32>
    %101 = arith.mulf %100, %99 : vector<1x3xf32>
    %102 = arith.mulf %101, %99 : vector<1x3xf32>
    %103 = vector.shape_cast %102 : vector<1x3xf32> to vector<1x1x3xf32>
    %cst_36 = arith.constant dense<0.000000e+00> : vector<1xf32>
    %104 = vector.multi_reduction <add>, %103, %cst_36 [1, 2] : vector<1x1x3xf32> to vector<1xf32>
    %105 = vector.shape_cast %104 : vector<1xf32> to vector<1x1x1xf32>
    %106 = vector.extract %105[0, 0, 0] : f32 from vector<1x1x1xf32>
    %107 = vector.broadcast %106 : f32 to vector<1x1xf32>
    %cst_37 = arith.constant 3.000000e+00 : f32
    %108 = vector.broadcast %cst_37 : f32 to vector<1x1xf32>
    %109 = arith.divf %107, %108 : vector<1x1xf32>
    %c0_38 = arith.constant 0 : index
    %c0_39 = arith.constant 0 : index
    %110 = vector.load %arg14[%c0_38, %c0_39] : memref<1x1xf32, #tpu.memory_space<vmem>>, vector<1x1xf32>
    tpu.vector_store %arg14[%c0_38, %c0_39], %109 {strides = array<i32>} : memref<1x1xf32, #tpu.memory_space<vmem>>, vector<1x1xf32>,
    %111 = tpu.iota {dimensions = array<i32: 1>} : vector<16x3xi32>
    %112 = arith.sitofp %111 : vector<16x3xi32> to vector<16x3xf32>
    %cst_40 = arith.constant dense<0xFF800000> : vector<16xf32>
    %113 = vector.multi_reduction <maximumf>, %95, %cst_40 [1] : vector<16x3xf32> to vector<16xf32>
    %114 = vector.shape_cast %113 : vector<16xf32> to vector<16x1xf32>
    %115 = vector.broadcast %114 : vector<16x1xf32> to vector<16x3xf32>
    %116 = arith.cmpf oge, %95, %115 : vector<16x3xf32>
    %cst_41 = arith.constant 3.000000e+00 : f32
    %117 = vector.broadcast %cst_41 : f32 to vector<16x3xf32>
    %118 = arith.select %116, %112, %117 : vector<16x3xi1>, vector<16x3xf32>
    %cst_42 = arith.constant dense<0x7F800000> : vector<16xf32>
    %119 = vector.multi_reduction <minimumf>, %118, %cst_42 [1] : vector<16x3xf32> to vector<16xf32>
    %120 = vector.shape_cast %119 : vector<16xf32> to vector<16x1xf32>
    %c0_43 = arith.constant 0 : index
    %c0_44 = arith.constant 0 : index
    %121 = vector.load %arg10[%c0_43, %c0_44] : memref<32x384xbf16, #tpu.memory_space<vmem>>, vector<32x384xbf16>
    %cst_45 = arith.constant dense<0.000000e+00> : vector<16x384xf32>
    %122 = tpu.matmul %83, %121, %cst_45 {dimension_numbers = #tpu.dot_dimension_numbers<[1], [0], [0], [1], [0, 0, 1, 1], [], []>} : vector<16x32xbf16>, vector<32x384xbf16>, vector<16x384xf32> -> vector<16x384xf32>
    %123 = vector.extract_strided_slice %122 {offsets = [0, 0], sizes = [16, 192], strides = [1, 1]} : vector<16x384xf32> to vector<16x192xf32>
    %124 = vector.extract_strided_slice %122 {offsets = [0, 192], sizes = [16, 192], strides = [1, 1]} : vector<16x384xf32> to vector<16x192xf32>
    %125 = arith.negf %123 : vector<16x192xf32>
    %126 = math.exp %125 : vector<16x192xf32>
    %cst_46 = arith.constant 1.000000e+00 : f32
    %127 = vector.broadcast %cst_46 : f32 to vector<16x192xf32>
    %128 = arith.addf %127, %126 : vector<16x192xf32>
    %129 = arith.divf %127, %128 : vector<16x192xf32>
    %130 = arith.mulf %123, %129 : vector<16x192xf32>
    %131 = arith.mulf %130, %124 : vector<16x192xf32>
    %c0_47 = arith.constant 0 : index
    %c0_48 = arith.constant 0 : index
    %132 = vector.load %arg12[%c0_47, %c0_48] : memref<1x192xf32, #tpu.memory_space<vmem>>, vector<1x192xf32>
    %133 = vector.broadcast %132 : vector<1x192xf32> to vector<16x192xf32>
    %134 = vector.broadcast %120 : vector<16x1xf32> to vector<16x192xf32>
    %135 = arith.cmpf oeq, %133, %134 : vector<16x192xf32>
    %cst_49 = arith.constant 0.000000e+00 : f32
    %136 = vector.broadcast %cst_49 : f32 to vector<16x192xf32>
    %137 = arith.select %135, %131, %136 : vector<16x192xi1>, vector<16x192xf32>
    %138 = arith.truncf %137 : vector<16x192xf32> to vector<16x192xbf16>
    %c0_50 = arith.constant 0 : index
    %c0_51 = arith.constant 0 : index
    %139 = vector.load %arg11[%c0_50, %c0_51] : memref<192x32xbf16, #tpu.memory_space<vmem>>, vector<192x32xbf16>
    %cst_52 = arith.constant dense<0.000000e+00> : vector<16x32xf32>
    %140 = tpu.matmul %138, %139, %cst_52 {dimension_numbers = #tpu.dot_dimension_numbers<[1], [0], [0], [1], [0, 0, 1, 1], [], []>} : vector<16x192xbf16>, vector<192x32xbf16>, vector<16x32xf32> -> vector<16x32xf32>
    %141 = arith.addf %140, %69 : vector<16x32xf32>
    %c0_53 = arith.constant 0 : index
    %c0_54 = arith.constant 0 : index
    %142 = vector.load %arg13[%c0_53, %c0_54] : memref<16x32xf32, #tpu.memory_space<vmem>>, vector<16x32xf32>
    tpu.vector_store %arg13[%c0_53, %c0_54], %141 {strides = array<i32>} : memref<16x32xf32, #tpu.memory_space<vmem>>, vector<16x32xf32>,
    return
  }
}

</mosaic_0001>

<llo_original>
// kernel: decoder_layer.1
$region0: #{decoder_layer.1}
  #allocation0 [shape = 'u32[]', space=smem, size = 0x4, offset = 0x4, fixed_abs, tag = 'smem constant byte address 0x4 - core index']
  #allocation1 [shape = 'u32[144,128]{1,0:T(1,128)}', space=vmem, size = 0x12000, scoped, tag = 'internal scratch']
  %s0 = inlined_call_operand.vmem [shape: f32[16,32], index: 0, kind: input, shape index: {}]
  %s1 = inlined_call_operand.vmem [shape: f32[1,32], index: 1, kind: input, shape index: {}]
  %s2 = inlined_call_operand.vmem [shape: f32[1,32], index: 2, kind: input, shape index: {}]
  %s3 = inlined_call_operand.vmem [shape: bf16[32,96], index: 3, kind: input, shape index: {}]
  %s4 = inlined_call_operand.vmem [shape: f32[1,96], index: 4, kind: input, shape index: {}]
  %s5 = inlined_call_operand.vmem [shape: bf16[32,32], index: 5, kind: input, shape index: {}]
  %s6 = inlined_call_operand.vmem [shape: f32[128,8], index: 6, kind: input, shape index: {}]
  %s7 = inlined_call_operand.vmem [shape: f32[128,8], index: 7, kind: input, shape index: {}]
  %s8 = inlined_call_operand.vmem [shape: f32[64,64], index: 8, kind: input, shape index: {}]
  %s9 = inlined_call_operand.vmem [shape: bf16[32,3], index: 9, kind: input, shape index: {}]
  %s10 = inlined_call_operand.vmem [shape: bf16[32,384], index: 10, kind: input, shape index: {}]
  %s11 = inlined_call_operand.vmem [shape: bf16[192,32], index: 11, kind: input, shape index: {}]
  %s12 = inlined_call_operand.vmem [shape: f32[1,192], index: 12, kind: input, shape index: {}]
  %s13 = inlined_call_operand.hbm [shape: f32[16,32], index: 13, kind: output, shape index: {0}]
  %s14 = inlined_call_operand.hbm [shape: f32[1,1], index: 14, kind: output, shape index: {1}]
  %15 = xla_tuple %s13, %s14
  %s16 = sld [smem:[#allocation0]]
  $region70: #{decoder_layer.1} parent=0
    _
  %s18 = ssub.s32 1, %s16
  %s19 = scalar_select 0, %s18, %s16
  $region1: #{decoder_layer.1} parent=0
    #allocation2 [shape = 'u8[8192]{0}', space=vmem, size = 0x2000, scoped, tag = 'output window, operand 0, single buffered']
    #allocation3 [shape = 's32[1]{0}', space=sflag, size = 0x4, scoped, tag = 'scoped memory for decoder_layer.1']
    #allocation4 [shape = 'u8[512]{0}', space=vmem, size = 0x400, scoped, tag = 'output window, operand 1, single buffered']
    #allocation5 [shape = 's32[1]{0}', space=sflag, size = 0x4, scoped, tag = 'scoped memory for decoder_layer.1']
    %20 = vsyncpa [#allocation3], 0
    %21 = vsyncpa [#allocation5], 0
    // Predicated region
    $region2: #{decoder_layer.1} parent=1 // pred_check
      _
    $region3: #{decoder_layer.1} parent=1 // pred_check_branch
      %23 = sbr.rel (0) target = $region5
    $region4: #{decoder_layer.1} parent=1 // pred_region
      _
    $region5: #{decoder_layer.1} parent=1 // pred_fallthru
      _
    // Predicated region
    $region6: #{decoder_layer.1} parent=1 // pred_check
      _
    $region7: #{decoder_layer.1} parent=1 // pred_check_branch
      %25 = sbr.rel (0) target = $region9
    $region8: #{decoder_layer.1} parent=1 // pred_region
      _
    $region9: #{decoder_layer.1} parent=1 // pred_fallthru
      _
    // Predicated region
    $region10: #{decoder_layer.1} parent=1 // pred_check
      _
    $region11: #{decoder_layer.1} parent=1 // pred_check_branch
      %27 = sbr.rel (0) target = $region13
    $region12: #{decoder_layer.1} parent=1 // pred_region
      _
    $region13: #{decoder_layer.1} parent=1 // pred_fallthru
      _
    // Predicated region
    $region14: #{decoder_layer.1} parent=1 // pred_check
      _
    $region15: #{decoder_layer.1} parent=1 // pred_check_branch
      %29 = sbr.rel (0) target = $region17
    $region16: #{decoder_layer.1} parent=1 // pred_region
      _
    $region17: #{decoder_layer.1} parent=1 // pred_fallthru
      _
    // Predicated region
    $region18: #{decoder_layer.1} parent=1 // pred_check
      _
    $region19: #{decoder_layer.1} parent=1 // pred_check_branch
      %31 = sbr.rel (0) target = $region21
    $region20: #{decoder_layer.1} parent=1 // pred_region
      _
    $region21: #{decoder_layer.1} parent=1 // pred_fallthru
      _
    // Predicated region
    $region22: #{decoder_layer.1} parent=1 // pred_check
      _
    $region23: #{decoder_layer.1} parent=1 // pred_check_branch
      %33 = sbr.rel (0) target = $region25
    $region24: #{decoder_layer.1} parent=1 // pred_region
      _
    $region25: #{decoder_layer.1} parent=1 // pred_fallthru
      _
    // Predicated region
    $region26: #{decoder_layer.1} parent=1 // pred_check
      _
    $region27: #{decoder_layer.1} parent=1 // pred_check_branch
      %35 = sbr.rel (0) target = $region29
    $region28: #{decoder_layer.1} parent=1 // pred_region
      _
    $region29: #{decoder_layer.1} parent=1 // pred_fallthru
      _
    // Predicated region
    $region30: #{decoder_layer.1} parent=1 // pred_check
      _
    $region31: #{decoder_layer.1} parent=1 // pred_check_branch
      %37 = sbr.rel (0) target = $region33
    $region32: #{decoder_layer.1} parent=1 // pred_region
      _
    $region33: #{decoder_layer.1} parent=1 // pred_fallthru
      _
    // Predicated region
    $region34: #{decoder_layer.1} parent=1 // pred_check
      _
    $region35: #{decoder_layer.1} parent=1 // pred_check_branch
      %39 = sbr.rel (0) target = $region37
    $region36: #{decoder_layer.1} parent=1 // pred_region
      _
    $region37: #{decoder_layer.1} parent=1 // pred_fallthru
      _
    // Predicated region
    $region38: #{decoder_layer.1} parent=1 // pred_check
      _
    $region39: #{decoder_layer.1} parent=1 // pred_check_branch
      %41 = sbr.rel (0) target = $region41
    $region40: #{decoder_layer.1} parent=1 // pred_region
      _
    $region41: #{decoder_layer.1} parent=1 // pred_fallthru
      _
    // Predicated region
    $region42: #{decoder_layer.1} parent=1 // pred_check
      _
    $region43: #{decoder_layer.1} parent=1 // pred_check_branch
      %43 = sbr.rel (0) target = $region45
    $region44: #{decoder_layer.1} parent=1 // pred_region
      _
    $region45: #{decoder_layer.1} parent=1 // pred_fallthru
      _
    // Predicated region
    $region46: #{decoder_layer.1} parent=1 // pred_check
      _
    $region47: #{decoder_layer.1} parent=1 // pred_check_branch
      %45 = sbr.rel (0) target = $region49
    $region48: #{decoder_layer.1} parent=1 // pred_region
      _
    $region49: #{decoder_layer.1} parent=1 // pred_fallthru
      _
    // Predicated region
    $region50: #{decoder_layer.1} parent=1 // pred_check
      _
    $region51: #{decoder_layer.1} parent=1 // pred_check_branch
      %47 = sbr.rel (0) target = $region53
    $region52: #{decoder_layer.1} parent=1 // pred_region
      _
    $region53: #{decoder_layer.1} parent=1 // pred_fallthru
      _
    %v49 = vld [vmem:[%s0] sm:$0xff]
    %v50 = vld [vmem:[%s0 + $0x8] sm:$0xff]
    %v51 = vmul.f32 %v49, %v49
    %v52 = vmul.f32 %v50, %v50
    %vm53 = vcmask 261120
    %v54 = vsel %vm53, %v51, 0.0
    %55 = vadd.xlane.f32.xlu0 %v54
    %v56 = vpop.xlane.xlu0 %55
    %v57 = vsel %vm53, %v52, 0.0
    %58 = vadd.xlane.f32.xlu0 %v57
    %v59 = vpop.xlane.xlu0 %58
    %v60 = vrcp.pop 32.0
    %v61 = vmul.f32 %v56, %v60
    %v62 = vmul.f32 %v59, %v60
    %v63 = vadd.f32 %v61, 1e-06
    %v64 = vadd.f32 %v62, 1e-06
    %v65 = vrsqrt.pop %v63
    %v66 = vrsqrt.pop %v64
    %v67 = vmul.f32 %v49, %v65
    %v68 = vmul.f32 %v50, %v66
    %v69 = vld [vmem:[%s1] sm:$0x1]
    %v71 = vlaneseq
    %v72 = vshrl.u32 %v71, 7
    %v73 = vsub.s32 0, %v72
    %v74 = vrot.slane %v69, %v73
    %v76 = vmul.f32 %v67, %v74
    %v77 = vmul.f32 %v68, %v74
    %v78 = vpack.c.bf16 %v77, %v76
    %v79 = vld [vmem:[%s3] sm:$0xf]
    %v80 = vld [vmem:[%s3 + $0x4] sm:$0xf]
    %v81 = vld [vmem:[%s3 + $0x8] sm:$0xf]
    %v82 = vld [vmem:[%s3 + $0xc] sm:$0xf]
    %v83 = vld [vmem:[%s4] sm:$0x1]
    %v85 = vlaneseq
    %v86 = vshrl.u32 %v85, 7
    %v87 = vsub.s32 0, %v86
    %v88 = vrot.slane %v83, %v87
    %v94 = vunpack.c.l.b16 %v79
    %v95 = vunpack.c.l.b16 %v80
    %v96 = vunpack.c.l.b16 %v81
    %v97 = vunpack.c.l.b16 %v82
    %v98 = vpack.c.b16 %v95, %v94
    %v99 = vpack.c.b16 %v97, %v96
    %v103 = vsel %vm53, %v78, 0
    %105 = vmatprep.subr.bf16.mxu0 0
    %106 = vmatpush1.bf16.msra.mxu0 0
    %107 = vmatprep.subr.bf16.mxu0 0
    %108 = vmatpush1.bf16.msra.mxu0 0
    %109 = vmatprep.subr.bf16.mxu0 0
    %110 = vmatpush1.bf16.msra.mxu0 0
    %111 = vmatprep.subr.bf16.mxu0 0
    %112 = vmatpush1.bf16.msra.mxu0 0
    %113 = vmatprep.subr.bf16.mxu0 0
    %114 = vmatpush1.bf16.msra.mxu0 0
    %115 = vmatprep.subr.bf16.mxu0 0
    %116 = vmatpush1.bf16.msra.mxu0 0
    %117 = vmatprep.subr.bf16.mxu0 0
    %118 = vmatpush1.bf16.msra.mxu0 %v99
    %119 = vmatprep.subr.bf16.mxu0 0
    %120 = vmatpush1.bf16.msra.mxu0 %v98
    %121 = vmatprep.subr.bf16.mxu0 0
    %122 = vmatpush2.bf16.msra.mxu0 0
    %123 = vmatprep.subr.bf16.mxu0 0
    %124 = vmatpush2.bf16.msra.mxu0 0
    %125 = vmatprep.subr.bf16.mxu0 0
    %126 = vmatpush2.bf16.msra.mxu0 0
    %127 = vmatprep.subr.bf16.mxu0 0
    %128 = vmatpush2.bf16.msra.mxu0 0
    %129 = vmatprep.subr.bf16.mxu0 0
    %130 = vmatpush2.bf16.msra.mxu0 0
    %131 = vmatprep.subr.bf16.mxu0 0
    %132 = vmatpush2.bf16.msra.mxu0 0
    %133 = vmatprep.subr.bf16.mxu0 0
    %134 = vmatpush2.bf16.msra.mxu0 0
    %135 = vmatprep.subr.bf16.mxu0 0
    %136 = vmatpush2.bf16.msra.mxu0 0
    %137 = vmatprep.mubr.bf16.mxu0 0
    %138 = vmatmul.mubr.bf16.gmra.mxu0 %v103
    %v139 = vpop.f32.mrf.mxu0
    %v140 = vadd.f32 %v88, %v139
    %v141 = vpop.f32.mrf.mxu0
    %v142 = vpop.f32.mrf.mxu0
    %v143 = vadd.f32 %v88, %v142
    %v144 = vpop.f32.mrf.mxu0
    %145 = vdwg.mxu0
    %148 = vrot.lane.b32.xlu0 %v140, 120
    %v149 = vpop.permute.xlu0 %148
    %150 = vrot.lane.b32.xlu0 %v143, 120
    %v151 = vpop.permute.xlu0 %150
    %154 = vrot.lane.b32.xlu0 %v140, 112
    %v155 = vpop.permute.xlu0 %154
    %156 = vrot.lane.b32.xlu0 %v143, 112
    %v157 = vpop.permute.xlu0 %156
    %160 = vrot.lane.b32.xlu0 %v140, 104
    %v161 = vpop.permute.xlu0 %160
    %162 = vrot.lane.b32.xlu0 %v143, 104
    %v163 = vpop.permute.xlu0 %162
    %166 = vrot.lane.b32.xlu0 %v140, 96
    %v167 = vpop.permute.xlu0 %166
    %168 = vrot.lane.b32.xlu0 %v143, 96
    %v169 = vpop.permute.xlu0 %168
    %172 = vrot.lane.b32.xlu0 %v140, 88
    %v173 = vpop.permute.xlu0 %172
    %174 = vrot.lane.b32.xlu0 %v143, 88
    %v175 = vpop.permute.xlu0 %174
    %178 = vrot.lane.b32.xlu0 %v140, 80
    %v179 = vpop.permute.xlu0 %178
    %180 = vrot.lane.b32.xlu0 %v143, 80
    %v181 = vpop.permute.xlu0 %180
    %184 = vrot.lane.b32.xlu0 %v140, 72
    %v185 = vpop.permute.xlu0 %184
    %186 = vrot.lane.b32.xlu0 %v143, 72
    %v187 = vpop.permute.xlu0 %186
    %v190 = vpack.c.bf16 %v143, %v140
    %v191 = vpack.c.bf16 %v151, %v149
    %v192 = vpack.c.bf16 %v157, %v155
    %v193 = vpack.c.bf16 %v163, %v161
    %194 = vrot.lane.b32.xlu0 %v140, 124
    %v195 = vpop.permute.xlu0 %194
    %196 = vrot.lane.b32.xlu0 %v143, 124
    %v197 = vpop.permute.xlu0 %196
    %198 = vrot.lane.b32.xlu0 %v149, 124
    %v199 = vpop.permute.xlu0 %198
    %200 = vrot.lane.b32.xlu0 %v151, 124
    %v201 = vpop.permute.xlu0 %200
    %202 = vrot.lane.b32.xlu0 %v155, 124
    %v203 = vpop.permute.xlu0 %202
    %204 = vrot.lane.b32.xlu0 %v157, 124
    %v205 = vpop.permute.xlu0 %204
    %206 = vrot.lane.b32.xlu0 %v161, 124
    %v207 = vpop.permute.xlu0 %206
    %208 = vrot.lane.b32.xlu0 %v163, 124
    %v209 = vpop.permute.xlu0 %208
    %210 = vrot.lane.b32.xlu0 %v167, 124
    %v211 = vpop.permute.xlu0 %210
    %212 = vrot.lane.b32.xlu0 %v169, 124
    %v213 = vpop.permute.xlu0 %212
    %214 = vrot.lane.b32.xlu0 %v173, 124
    %v215 = vpop.permute.xlu0 %214
    %216 = vrot.lane.b32.xlu0 %v175, 124
    %v217 = vpop.permute.xlu0 %216
    %218 = vrot.lane.b32.xlu0 %v179, 124
    %v219 = vpop.permute.xlu0 %218
    %220 = vrot.lane.b32.xlu0 %v181, 124
    %v221 = vpop.permute.xlu0 %220
    %222 = vrot.lane.b32.xlu0 %v185, 124
    %v223 = vpop.permute.xlu0 %222
    %224 = vrot.lane.b32.xlu0 %v187, 124
    %v225 = vpop.permute.xlu0 %224
    %242 = vrot.lane.b32.xlu0 %v140, 4
    %v243 = vpop.permute.xlu0 %242
    %244 = vrot.lane.b32.xlu0 %v143, 4
    %v245 = vpop.permute.xlu0 %244
    %246 = vrot.lane.b32.xlu0 %v149, 4
    %v247 = vpop.permute.xlu0 %246
    %248 = vrot.lane.b32.xlu0 %v151, 4
    %v249 = vpop.permute.xlu0 %248
    %250 = vrot.lane.b32.xlu0 %v155, 4
    %v251 = vpop.permute.xlu0 %250
    %252 = vrot.lane.b32.xlu0 %v157, 4
    %v253 = vpop.permute.xlu0 %252
    %254 = vrot.lane.b32.xlu0 %v161, 4
    %v255 = vpop.permute.xlu0 %254
    %256 = vrot.lane.b32.xlu0 %v163, 4
    %v257 = vpop.permute.xlu0 %256
    %258 = vrot.lane.b32.xlu0 %v167, 4
    %v259 = vpop.permute.xlu0 %258
    %260 = vrot.lane.b32.xlu0 %v169, 4
    %v261 = vpop.permute.xlu0 %260
    %262 = vrot.lane.b32.xlu0 %v173, 4
    %v263 = vpop.permute.xlu0 %262
    %264 = vrot.lane.b32.xlu0 %v175, 4
    %v265 = vpop.permute.xlu0 %264
    %266 = vrot.lane.b32.xlu0 %v179, 4
    %v267 = vpop.permute.xlu0 %266
    %268 = vrot.lane.b32.xlu0 %v181, 4
    %v269 = vpop.permute.xlu0 %268
    %270 = vrot.lane.b32.xlu0 %v185, 4
    %v271 = vpop.permute.xlu0 %270
    %272 = vrot.lane.b32.xlu0 %v187, 4
    %v273 = vpop.permute.xlu0 %272
    %vm290 = vcmask 31744
    %v291 = vsel %vm290, %v195, %v243
    %v292 = vsel %vm290, %v197, %v245
    %v293 = vsel %vm290, %v199, %v247
    %v294 = vsel %vm290, %v201, %v249
    %v295 = vsel %vm290, %v203, %v251
    %v296 = vsel %vm290, %v205, %v253
    %v297 = vsel %vm290, %v207, %v255
    %v298 = vsel %vm290, %v209, %v257
    %v299 = vsel %vm290, %v211, %v259
    %v300 = vsel %vm290, %v213, %v261
    %v301 = vsel %vm290, %v215, %v263
    %v302 = vsel %vm290, %v217, %v265
    %v303 = vsel %vm290, %v219, %v267
    %v304 = vsel %vm290, %v221, %v269
    %v305 = vsel %vm290, %v223, %v271
    %v306 = vsel %vm290, %v225, %v273
    %v307 = vld [vmem:[%s6] sm:$0xff]
    %v308 = vld [vmem:[%s6 + $0x8] sm:$0xff]
    %v309 = vld [vmem:[%s6 + $0x10] sm:$0xff]
    %v310 = vld [vmem:[%s6 + $0x18] sm:$0xff]
    %v311 = vld [vmem:[%s6 + $0x20] sm:$0xff]
    %v312 = vld [vmem:[%s6 + $0x28] sm:$0xff]
    %v313 = vld [vmem:[%s6 + $0x30] sm:$0xff]
    %v314 = vld [vmem:[%s6 + $0x38] sm:$0xff]
    %v315 = vld [vmem:[%s6 + $0x40] sm:$0xff]
    %v316 = vld [vmem:[%s6 + $0x48] sm:$0xff]
    %v317 = vld [vmem:[%s6 + $0x50] sm:$0xff]
    %v318 = vld [vmem:[%s6 + $0x58] sm:$0xff]
    %v319 = vld [vmem:[%s6 + $0x60] sm:$0xff]
    %v320 = vld [vmem:[%s6 + $0x68] sm:$0xff]
    %v321 = vld [vmem:[%s6 + $0x70] sm:$0xff]
    %v322 = vld [vmem:[%s6 + $0x78] sm:$0xff]
    %v323 = vmul.f32 %v140, %v307
    %v324 = vmul.f32 %v143, %v308
    %v325 = vmul.f32 %v149, %v309
    %v326 = vmul.f32 %v151, %v310
    %v327 = vmul.f32 %v155, %v311
    %v328 = vmul.f32 %v157, %v312
    %v329 = vmul.f32 %v161, %v313
    %v330 = vmul.f32 %v163, %v314
    %v331 = vmul.f32 %v167, %v315
    %v332 = vmul.f32 %v169, %v316
    %v333 = vmul.f32 %v173, %v317
    %v334 = vmul.f32 %v175, %v318
    %v335 = vmul.f32 %v179, %v319
    %v336 = vmul.f32 %v181, %v320
    %v337 = vmul.f32 %v185, %v321
    %v338 = vmul.f32 %v187, %v322
    %v339 = vld [vmem:[%s7] sm:$0xff]
    %v340 = vld [vmem:[%s7 + $0x8] sm:$0xff]
    %v341 = vld [vmem:[%s7 + $0x10] sm:$0xff]
    %v342 = vld [vmem:[%s7 + $0x18] sm:$0xff]
    %v343 = vld [vmem:[%s7 + $0x20] sm:$0xff]
    %v344 = vld [vmem:[%s7 + $0x28] sm:$0xff]
    %v345 = vld [vmem:[%s7 + $0x30] sm:$0xff]
    %v346 = vld [vmem:[%s7 + $0x38] sm:$0xff]
    %v347 = vld [vmem:[%s7 + $0x40] sm:$0xff]
    %v348 = vld [vmem:[%s7 + $0x48] sm:$0xff]
    %v349 = vld [vmem:[%s7 + $0x50] sm:$0xff]
    %v350 = vld [vmem:[%s7 + $0x58] sm:$0xff]
    %v351 = vld [vmem:[%s7 + $0x60] sm:$0xff]
    %v352 = vld [vmem:[%s7 + $0x68] sm:$0xff]
    %v353 = vld [vmem:[%s7 + $0x70] sm:$0xff]
    %v354 = vld [vmem:[%s7 + $0x78] sm:$0xff]
    %v355 = vmul.f32 %v291, %v339
    %v356 = vmul.f32 %v292, %v340
    %v357 = vmul.f32 %v293, %v341
    %v358 = vmul.f32 %v294, %v342
    %v359 = vmul.f32 %v295, %v343
    %v360 = vmul.f32 %v296, %v344
    %v361 = vmul.f32 %v297, %v345
    %v362 = vmul.f32 %v298, %v346
    %v363 = vmul.f32 %v299, %v347
    %v364 = vmul.f32 %v300, %v348
    %v365 = vmul.f32 %v301, %v349
    %v366 = vmul.f32 %v302, %v350
    %v367 = vmul.f32 %v303, %v351
    %v368 = vmul.f32 %v304, %v352
    %v369 = vmul.f32 %v305, %v353
    %v370 = vmul.f32 %v306, %v354
    %v371 = vadd.f32 %v323, %v355
    %v372 = vadd.f32 %v324, %v356
    %v373 = vadd.f32 %v325, %v357
    %v374 = vadd.f32 %v326, %v358
    %v375 = vadd.f32 %v327, %v359
    %v376 = vadd.f32 %v328, %v360
    %v377 = vadd.f32 %v329, %v361
    %v378 = vadd.f32 %v330, %v362
    %v379 = vadd.f32 %v331, %v363
    %v380 = vadd.f32 %v332, %v364
    %v381 = vadd.f32 %v333, %v365
    %v382 = vadd.f32 %v334, %v366
    %v383 = vadd.f32 %v335, %v367
    %v384 = vadd.f32 %v336, %v368
    %v385 = vadd.f32 %v337, %v369
    %v386 = vadd.f32 %v338, %v370
    %v387 = vpack.c.bf16 %v372, %v371
    %v388 = vpack.c.bf16 %v374, %v373
    %v389 = vpack.c.bf16 %v376, %v375
    %v390 = vpack.c.bf16 %v378, %v377
    %v391 = vpack.c.bf16 %v380, %v379
    %v392 = vpack.c.bf16 %v382, %v381
    %v393 = vpack.c.bf16 %v384, %v383
    %v394 = vpack.c.bf16 %v386, %v385
    %v395 = vld [vmem:[%s8] sm:$0xff]
    %v396 = vld [vmem:[%s8 + $0x8] sm:$0xff]
    %v397 = vld [vmem:[%s8 + $0x10] sm:$0xff]
    %v398 = vld [vmem:[%s8 + $0x18] sm:$0xff]
    %v399 = vld [vmem:[%s8 + $0x20] sm:$0xff]
    %v400 = vld [vmem:[%s8 + $0x28] sm:$0xff]
    %v401 = vld [vmem:[%s8 + $0x30] sm:$0xff]
    %v402 = vld [vmem:[%s8 + $0x38] sm:$0xff]
    %vm403 = vcmask 64512
    %v405 = vsel %vm403, %v387, 0
    %v408 = vsel %vm403, %v388, 0
    %v411 = vsel %vm403, %v389, 0
    %v414 = vsel %vm403, %v390, 0
    %v417 = vsel %vm403, %v391, 0
    %v420 = vsel %vm403, %v392, 0
    %v423 = vsel %vm403, %v393, 0
    %v426 = vsel %vm403, %v394, 0
    %428 = vmatprep.subr.bf16.mxu0 0
    %429 = vmatpush1.bf16.xpose.msra.mxu0 0
    %430 = vmatprep.subr.bf16.mxu0 0
    %431 = vmatpush1.bf16.xpose.msra.mxu0 0
    %432 = vmatprep.subr.bf16.mxu0 0
    %433 = vmatpush1.bf16.xpose.msra.mxu0 0
    %434 = vmatprep.subr.bf16.mxu0 0
    %435 = vmatpush1.bf16.xpose.msra.mxu0 0
    %436 = vmatprep.subr.bf16.mxu0 0
    %437 = vmatpush1.bf16.xpose.msra.mxu0 %v426
    %438 = vmatprep.subr.bf16.mxu0 0
    %439 = vmatpush1.bf16.xpose.msra.mxu0 %v423
    %440 = vmatprep.subr.bf16.mxu0 0
    %441 = vmatpush1.bf16.xpose.msra.mxu0 %v420
    %442 = vmatprep.subr.bf16.mxu0 0
    %443 = vmatpush1.bf16.xpose.msra.mxu0 %v417
    %444 = vmatprep.subr.bf16.mxu0 0
    %445 = vmatpush2.bf16.xpose.msra.mxu0 0
    %446 = vmatprep.subr.bf16.mxu0 0
    %447 = vmatpush2.bf16.xpose.msra.mxu0 0
    %448 = vmatprep.subr.bf16.mxu0 0
    %449 = vmatpush2.bf16.xpose.msra.mxu0 0
    %450 = vmatprep.subr.bf16.mxu0 0
    %451 = vmatpush2.bf16.xpose.msra.mxu0 0
    %452 = vmatprep.subr.bf16.mxu0 0
    %453 = vmatpush2.bf16.xpose.msra.mxu0 0
    %454 = vmatprep.subr.bf16.mxu0 0
    %455 = vmatpush2.bf16.xpose.msra.mxu0 0
    %456 = vmatprep.subr.bf16.mxu0 0
    %457 = vmatpush2.bf16.xpose.msra.mxu0 0
    %458 = vmatprep.subr.bf16.mxu0 0
    %459 = vmatpush2.bf16.xpose.msra.mxu0 0
    %460 = vmatprep.mubr.bf16.mxu0 0
    %461 = vmatmul.mubr.bf16.gmra.mxu0 %v405
    %v462 = vpop.f32.mrf.mxu0
    %v463 = vadd.f32 %v395, %v462
    %v464 = vpop.f32.mrf.mxu0
    %v465 = vpop.f32.mrf.mxu0
    %v466 = vadd.f32 %v396, %v465
    %v467 = vpop.f32.mrf.mxu0
    %468 = vmatprep.mubr.bf16.mxu0 0
    %469 = vmatmul.mubr.bf16.gmra.mxu0 %v408
    %v470 = vpop.f32.mrf.mxu0
    %v471 = vadd.f32 %v397, %v470
    %v472 = vpop.f32.mrf.mxu0
    %v473 = vpop.f32.mrf.mxu0
    %v474 = vadd.f32 %v398, %v473
    %v475 = vpop.f32.mrf.mxu0
    %476 = vmatprep.mubr.bf16.mxu0 0
    %477 = vmatmul.mubr.bf16.gmra.mxu0 %v411
    %v478 = vpop.f32.mrf.mxu0
    %v479 = vadd.f32 %v399, %v478
    %v480 = vpop.f32.mrf.mxu0
    %v481 = vpop.f32.mrf.mxu0
    %v482 = vadd.f32 %v400, %v481
    %v483 = vpop.f32.mrf.mxu0
    %484 = vmatprep.mubr.bf16.mxu0 0
    %485 = vmatmul.mubr.bf16.gmra.mxu0 %v414
    %v486 = vpop.f32.mrf.mxu0
    %v487 = vadd.f32 %v401, %v486
    %v488 = vpop.f32.mrf.mxu0
    %v489 = vpop.f32.mrf.mxu0
    %v490 = vadd.f32 %v402, %v489
    %v491 = vpop.f32.mrf.mxu0
    %492 = vdwg.mxu0
    %vm493 = vcmask 523264
    %v494 = vsel %vm493, %v463, -inf
    %495 = vmax.xlane.f32.xlu0 %v494
    %v496 = vpop.xlane.xlu0 %495
    %v497 = vsel %vm493, %v466, -inf
    %498 = vmax.xlane.f32.xlu0 %v497
    %v499 = vpop.xlane.xlu0 %498
    %v500 = vsel %vm493, %v471, -inf
    %501 = vmax.xlane.f32.xlu0 %v500
    %v502 = vpop.xlane.xlu0 %501
    %v503 = vsel %vm493, %v474, -inf
    %504 = vmax.xlane.f32.xlu0 %v503
    %v505 = vpop.xlane.xlu0 %504
    %v506 = vsel %vm493, %v479, -inf
    %507 = vmax.xlane.f32.xlu0 %v506
    %v508 = vpop.xlane.xlu0 %507
    %v509 = vsel %vm493, %v482, -inf
    %510 = vmax.xlane.f32.xlu0 %v509
    %v511 = vpop.xlane.xlu0 %510
    %v512 = vsel %vm493, %v487, -inf
    %513 = vmax.xlane.f32.xlu0 %v512
    %v514 = vpop.xlane.xlu0 %513
    %v515 = vsel %vm493, %v490, -inf
    %516 = vmax.xlane.f32.xlu0 %v515
    %v517 = vpop.xlane.xlu0 %516
    %v518 = vsub.f32 %v463, %v496
    %v519 = vsub.f32 %v466, %v499
    %v520 = vsub.f32 %v471, %v502
    %v521 = vsub.f32 %v474, %v505
    %v522 = vsub.f32 %v479, %v508
    %v523 = vsub.f32 %v482, %v511
    %v524 = vsub.f32 %v487, %v514
    %v525 = vsub.f32 %v490, %v517
    %v526 = vmul.f32 %v518, 1.442695
    %v527 = vpow.pop %v526
    %v528 = vmul.f32 %v519, 1.442695
    %v529 = vpow.pop %v528
    %v530 = vmul.f32 %v520, 1.442695
    %v531 = vpow.pop %v530
    %v532 = vmul.f32 %v521, 1.442695
    %v533 = vpow.pop %v532
    %v534 = vmul.f32 %v522, 1.442695
    %v535 = vpow.pop %v534
    %v536 = vmul.f32 %v523, 1.442695
    %v537 = vpow.pop %v536
    %v538 = vmul.f32 %v524, 1.442695
    %v539 = vpow.pop %v538
    %v540 = vmul.f32 %v525, 1.442695
    %v541 = vpow.pop %v540
    %v542 = vsel %vm493, %v527, 0.0
    %543 = vadd.xlane.f32.xlu0 %v542
    %v544 = vpop.xlane.xlu0 %543
    %v545 = vsel %vm493, %v529, 0.0
    %546 = vadd.xlane.f32.xlu0 %v545
    %v547 = vpop.xlane.xlu0 %546
    %v548 = vsel %vm493, %v531, 0.0
    %549 = vadd.xlane.f32.xlu0 %v548
    %v550 = vpop.xlane.xlu0 %549
    %v551 = vsel %vm493, %v533, 0.0
    %552 = vadd.xlane.f32.xlu0 %v551
    %v553 = vpop.xlane.xlu0 %552
    %v554 = vsel %vm493, %v535, 0.0
    %555 = vadd.xlane.f32.xlu0 %v554
    %v556 = vpop.xlane.xlu0 %555
    %v557 = vsel %vm493, %v537, 0.0
    %558 = vadd.xlane.f32.xlu0 %v557
    %v559 = vpop.xlane.xlu0 %558
    %v560 = vsel %vm493, %v539, 0.0
    %561 = vadd.xlane.f32.xlu0 %v560
    %v562 = vpop.xlane.xlu0 %561
    %v563 = vsel %vm493, %v541, 0.0
    %564 = vadd.xlane.f32.xlu0 %v563
    %v565 = vpop.xlane.xlu0 %564
    %v566 = vrcp.pop %v544
    %v567 = vrcp.pop %v547
    %v568 = vrcp.pop %v550
    %v569 = vrcp.pop %v553
    %v570 = vrcp.pop %v556
    %v571 = vrcp.pop %v559
    %v572 = vrcp.pop %v562
    %v573 = vrcp.pop %v565
    %v574 = vmul.f32 %v527, %v566
    %v575 = vmul.f32 %v529, %v567
    %v576 = vmul.f32 %v531, %v568
    %v577 = vmul.f32 %v533, %v569
    %v578 = vmul.f32 %v535, %v570
    %v579 = vmul.f32 %v537, %v571
    %v580 = vmul.f32 %v539, %v572
    %v581 = vmul.f32 %v541, %v573
    %v582 = vpack.c.bf16 %v575, %v574
    %v583 = vpack.c.bf16 %v577, %v576
    %v584 = vpack.c.bf16 %v579, %v578
    %v585 = vpack.c.bf16 %v581, %v580
    %590 = vrot.lane.b32.xlu0 %v190, 64
    %v591 = vpop.permute.xlu0 %590
    %592 = vrot.lane.b32.xlu0 %v191, 64
    %v593 = vpop.permute.xlu0 %592
    %594 = vrot.lane.b32.xlu0 %v192, 64
    %v595 = vpop.permute.xlu0 %594
    %596 = vrot.lane.b32.xlu0 %v193, 64
    %v597 = vpop.permute.xlu0 %596
    %v603 = vsel %vm493, %v582, 0
    %v606 = vsel %vm493, %v583, 0
    %v609 = vsel %vm493, %v584, 0
    %v612 = vsel %vm493, %v585, 0
    %614 = vmatprep.subr.bf16.mxu0 0
    %615 = vmatpush1.bf16.msra.mxu0 0
    %616 = vmatprep.subr.bf16.mxu0 0
    %617 = vmatpush1.bf16.msra.mxu0 0
    %618 = vmatprep.subr.bf16.mxu0 0
    %619 = vmatpush1.bf16.msra.mxu0 0
    %620 = vmatprep.subr.bf16.mxu0 0
    %621 = vmatpush1.bf16.msra.mxu0 0
    %622 = vmatprep.subr.bf16.mxu0 0
    %623 = vmatpush1.bf16.msra.mxu0 %v597
    %624 = vmatprep.subr.bf16.mxu0 0
    %625 = vmatpush1.bf16.msra.mxu0 %v595
    %626 = vmatprep.subr.bf16.mxu0 0
    %627 = vmatpush1.bf16.msra.mxu0 %v593
    %628 = vmatprep.subr.bf16.mxu0 0
    %629 = vmatpush1.bf16.msra.mxu0 %v591
    %630 = vmatprep.subr.bf16.mxu0 0
    %631 = vmatpush2.bf16.msra.mxu0 0
    %632 = vmatprep.subr.bf16.mxu0 0
    %633 = vmatpush2.bf16.msra.mxu0 0
    %634 = vmatprep.subr.bf16.mxu0 0
    %635 = vmatpush2.bf16.msra.mxu0 0
    %636 = vmatprep.subr.bf16.mxu0 0
    %637 = vmatpush2.bf16.msra.mxu0 0
    %638 = vmatprep.subr.bf16.mxu0 0
    %639 = vmatpush2.bf16.msra.mxu0 0
    %640 = vmatprep.subr.bf16.mxu0 0
    %641 = vmatpush2.bf16.msra.mxu0 0
    %642 = vmatprep.subr.bf16.mxu0 0
    %643 = vmatpush2.bf16.msra.mxu0 0
    %644 = vmatprep.subr.bf16.mxu0 0
    %645 = vmatpush2.bf16.msra.mxu0 0
    %646 = vmatprep.mubr.bf16.mxu0 0
    %647 = vmatmul.mubr.bf16.gmra.mxu0 %v603
    %v648 = vpop.f32.mrf.mxu0
    %v649 = vadd.f32 0.0, %v648
    %v650 = vpop.f32.mrf.mxu0
    %v651 = vpop.f32.mrf.mxu0
    %v652 = vadd.f32 0.0, %v651
    %v653 = vpop.f32.mrf.mxu0
    %654 = vmatprep.mubr.bf16.mxu0 0
    %655 = vmatmul.mubr.bf16.gmra.mxu0 %v606
    %v656 = vpop.f32.mrf.mxu0
    %v657 = vadd.f32 0.0, %v656
    %v658 = vpop.f32.mrf.mxu0
    %v659 = vpop.f32.mrf.mxu0
    %v660 = vadd.f32 0.0, %v659
    %v661 = vpop.f32.mrf.mxu0
    %662 = vmatprep.mubr.bf16.mxu0 0
    %663 = vmatmul.mubr.bf16.gmra.mxu0 %v609
    %v664 = vpop.f32.mrf.mxu0
    %v665 = vadd.f32 0.0, %v664
    %v666 = vpop.f32.mrf.mxu0
    %v667 = vpop.f32.mrf.mxu0
    %v668 = vadd.f32 0.0, %v667
    %v669 = vpop.f32.mrf.mxu0
    %670 = vmatprep.mubr.bf16.mxu0 0
    %671 = vmatmul.mubr.bf16.gmra.mxu0 %v612
    %v672 = vpop.f32.mrf.mxu0
    %v673 = vadd.f32 0.0, %v672
    %v674 = vpop.f32.mrf.mxu0
    %v675 = vpop.f32.mrf.mxu0
    %v676 = vadd.f32 0.0, %v675
    %v677 = vpop.f32.mrf.mxu0
    %678 = vdwg.mxu0
    %681 = vrot.lane.b32.xlu0 %v657, 8
    %v682 = vpop.permute.xlu0 %681
    %683 = vrot.lane.b32.xlu0 %v660, 8
    %v684 = vpop.permute.xlu0 %683
    %689 = vrot.lane.b32.xlu0 %v665, 16
    %v690 = vpop.permute.xlu0 %689
    %691 = vrot.lane.b32.xlu0 %v668, 16
    %v692 = vpop.permute.xlu0 %691
    %697 = vrot.lane.b32.xlu0 %v673, 24
    %v698 = vpop.permute.xlu0 %697
    %699 = vrot.lane.b32.xlu0 %v676, 24
    %v700 = vpop.permute.xlu0 %699
    %v703 = vsel %vm403, %v649, %v682
    %v704 = vsel %vm403, %v652, %v684
    %vm705 = vcmask 130048
    %v706 = vsel %vm705, %v703, %v690
    %v707 = vsel %vm705, %v704, %v692
    %vm708 = vcmask 195584
    %v709 = vsel %vm708, %v706, %v698
    %v710 = vsel %vm708, %v707, %v700
    %v711 = vpack.c.bf16 %v710, %v709
    %v712 = vld [vmem:[%s5] sm:$0xf]
    %v713 = vld [vmem:[%s5 + $0x4] sm:$0xf]
    %v714 = vld [vmem:[%s5 + $0x8] sm:$0xf]
    %v715 = vld [vmem:[%s5 + $0xc] sm:$0xf]
    %v720 = vunpack.c.l.b16 %v712
    %v721 = vunpack.c.l.b16 %v713
    %v722 = vunpack.c.l.b16 %v714
    %v723 = vunpack.c.l.b16 %v715
    %v724 = vpack.c.b16 %v721, %v720
    %v725 = vpack.c.b16 %v723, %v722
    %v729 = vsel %vm53, %v711, 0
    %731 = vmatprep.subr.bf16.mxu0 0
    %732 = vmatpush1.bf16.msra.mxu0 0
    %733 = vmatprep.subr.bf16.mxu0 0
    %734 = vmatpush1.bf16.msra.mxu0 0
    %735 = vmatprep.subr.bf16.mxu0 0
    %736 = vmatpush1.bf16.msra.mxu0 0
    %737 = vmatprep.subr.bf16.mxu0 0
    %738 = vmatpush1.bf16.msra.mxu0 0
    %739 = vmatprep.subr.bf16.mxu0 0
    %740 = vmatpush1.bf16.msra.mxu0 0
    %741 = vmatprep.subr.bf16.mxu0 0
    %742 = vmatpush1.bf16.msra.mxu0 0
    %743 = vmatprep.subr.bf16.mxu0 0
    %744 = vmatpush1.bf16.msra.mxu0 %v725
    %745 = vmatprep.subr.bf16.mxu0 0
    %746 = vmatpush1.bf16.msra.mxu0 %v724
    %747 = vmatprep.subr.bf16.mxu0 0
    %748 = vmatpush2.bf16.msra.mxu0 0
    %749 = vmatprep.subr.bf16.mxu0 0
    %750 = vmatpush2.bf16.msra.mxu0 0
    %751 = vmatprep.subr.bf16.mxu0 0
    %752 = vmatpush2.bf16.msra.mxu0 0
    %753 = vmatprep.subr.bf16.mxu0 0
    %754 = vmatpush2.bf16.msra.mxu0 0
    %755 = vmatprep.subr.bf16.mxu0 0
    %756 = vmatpush2.bf16.msra.mxu0 0
    %757 = vmatprep.subr.bf16.mxu0 0
    %758 = vmatpush2.bf16.msra.mxu0 0
    %759 = vmatprep.subr.bf16.mxu0 0
    %760 = vmatpush2.bf16.msra.mxu0 0
    %761 = vmatprep.subr.bf16.mxu0 0
    %762 = vmatpush2.bf16.msra.mxu0 0
    %763 = vmatprep.mubr.bf16.mxu0 0
    %764 = vmatmul.mubr.bf16.gmra.mxu0 %v729
    %v765 = vpop.f32.mrf.mxu0
    %v766 = vadd.f32 %v49, %v765
    %v767 = vpop.f32.mrf.mxu0
    %v768 = vpop.f32.mrf.mxu0
    %v769 = vadd.f32 %v50, %v768
    %v770 = vpop.f32.mrf.mxu0
    %771 = vdwg.mxu0
    %v772 = vmul.f32 %v766, %v766
    %v773 = vmul.f32 %v769, %v769
    %v774 = vsel %vm53, %v772, 0.0
    %775 = vadd.xlane.f32.xlu0 %v774
    %v776 = vpop.xlane.xlu0 %775
    %v777 = vsel %vm53, %v773, 0.0
    %778 = vadd.xlane.f32.xlu0 %v777
    %v779 = vpop.xlane.xlu0 %778
    %v780 = vmul.f32 %v776, %v60
    %v781 = vmul.f32 %v779, %v60
    %v782 = vadd.f32 %v780, 1e-06
    %v783 = vadd.f32 %v781, 1e-06
    %v784 = vrsqrt.pop %v782
    %v785 = vrsqrt.pop %v783
    %v786 = vmul.f32 %v766, %v784
    %v787 = vmul.f32 %v769, %v785
    %v788 = vld [vmem:[%s2] sm:$0x1]
    %v790 = vlaneseq
    %v791 = vshrl.u32 %v790, 7
    %v792 = vsub.s32 0, %v791
    %v793 = vrot.slane %v788, %v792
    %v795 = vmul.f32 %v786, %v793
    %v796 = vmul.f32 %v787, %v793
    %v797 = vpack.c.bf16 %v796, %v795
    %v798 = vld [vmem:[%s9] sm:$0xf]
    %v799 = vld [vmem:[%s9 + $0x4] sm:$0xf]
    %v800 = vld [vmem:[%s9 + $0x8] sm:$0xf]
    %v801 = vld [vmem:[%s9 + $0xc] sm:$0xf]
    %v806 = vunpack.c.l.b16 %v798
    %v807 = vunpack.c.l.b16 %v799
    %v808 = vunpack.c.l.b16 %v800
    %v809 = vunpack.c.l.b16 %v801
    %v810 = vpack.c.b16 %v807, %v806
    %v811 = vpack.c.b16 %v809, %v808
    %v815 = vsel %vm53, %v797, 0
    %817 = vmatprep.subr.bf16.mxu0 0
    %818 = vmatpush1.bf16.msra.mxu0 0
    %819 = vmatprep.subr.bf16.mxu0 0
    %820 = vmatpush1.bf16.msra.mxu0 0
    %821 = vmatprep.subr.bf16.mxu0 0
    %822 = vmatpush1.bf16.msra.mxu0 0
    %823 = vmatprep.subr.bf16.mxu0 0
    %824 = vmatpush1.bf16.msra.mxu0 0
    %825 = vmatprep.subr.bf16.mxu0 0
    %826 = vmatpush1.bf16.msra.mxu0 0
    %827 = vmatprep.subr.bf16.mxu0 0
    %828 = vmatpush1.bf16.msra.mxu0 0
    %829 = vmatprep.subr.bf16.mxu0 0
    %830 = vmatpush1.bf16.msra.mxu0 %v811
    %831 = vmatprep.subr.bf16.mxu0 0
    %832 = vmatpush1.bf16.msra.mxu0 %v810
    %833 = vmatprep.subr.bf16.mxu0 0
    %834 = vmatpush2.bf16.msra.mxu0 0
    %835 = vmatprep.subr.bf16.mxu0 0
    %836 = vmatpush2.bf16.msra.mxu0 0
    %837 = vmatprep.subr.bf16.mxu0 0
    %838 = vmatpush2.bf16.msra.mxu0 0
    %839 = vmatprep.subr.bf16.mxu0 0
    %840 = vmatpush2.bf16.msra.mxu0 0
    %841 = vmatprep.subr.bf16.mxu0 0
    %842 = vmatpush2.bf16.msra.mxu0 0
    %843 = vmatprep.subr.bf16.mxu0 0
    %844 = vmatpush2.bf16.msra.mxu0 0
    %845 = vmatprep.subr.bf16.mxu0 0
    %846 = vmatpush2.bf16.msra.mxu0 0
    %847 = vmatprep.subr.bf16.mxu0 0
    %848 = vmatpush2.bf16.msra.mxu0 0
    %849 = vmatprep.mubr.bf16.mxu0 0
    %850 = vmatmul.mubr.bf16.gmra.mxu0 %v815
    %v851 = vpop.f32.mrf.mxu0
    %v852 = vadd.f32 0.0, %v851
    %v853 = vpop.f32.mrf.mxu0
    %v854 = vpop.f32.mrf.mxu0
    %v855 = vadd.f32 0.0, %v854
    %v856 = vpop.f32.mrf.mxu0
    %857 = vdwg.mxu0
    %vm858 = vcmask 23552
    %v859 = vsel %vm858, %v852, -inf
    %860 = vmax.xlane.f32.xlu0 %v859
    %v861 = vpop.xlane.xlu0 %860
    %v862 = vsel %vm858, %v855, -inf
    %863 = vmax.xlane.f32.xlu0 %v862
    %v864 = vpop.xlane.xlu0 %863
    %v865 = vsub.f32 %v852, %v861
    %v866 = vsub.f32 %v855, %v864
    %v867 = vmul.f32 %v865, 1.442695
    %v868 = vpow.pop %v867
    %v869 = vmul.f32 %v866, 1.442695
    %v870 = vpow.pop %v869
    %v871 = vsel %vm858, %v868, 0.0
    %872 = vadd.xlane.f32.xlu0 %v871
    %v873 = vpop.xlane.xlu0 %872
    %v874 = vsel %vm858, %v870, 0.0
    %875 = vadd.xlane.f32.xlu0 %v874
    %v876 = vpop.xlane.xlu0 %875
    %v877 = vrcp.pop %v873
    %v878 = vrcp.pop %v876
    %v879 = vmul.f32 %v868, %v877
    %v880 = vmul.f32 %v870, %v878
    %v881 = vsel %vm858, %v879, 0.0
    %v882 = vsel %vm858, %v880, 0.0
    %v883 = vadd.f32 %v881, %v882
    %v884 = vrot.slane %v883, 4
    %v885 = vadd.f32 %v883, %v884
    %v886 = vrot.slane %v885, 2
    %v887 = vadd.f32 %v885, %v886
    %v888 = vrot.slane %v887, 1
    %v889 = vadd.f32 %v887, %v888
    %v890 = vrcp.pop 16.0
    %v891 = vmul.f32 %v889, %v890
    %v892 = vmul.f32 %v891, 3.0
    %v893 = vmul.f32 %v892, %v891
    %vm894 = vcmask 16384
    %v895 = vsel %vm894, %v893, 0.0
    %896 = vadd.xlane.f32.xlu0 %v895
    %v897 = vpop.xlane.xlu0 %896
    %v898 = vrot.slane %v897, 4
    %v899 = vadd.f32 %v897, %v898
    %v900 = vrot.slane %v899, 2
    %v901 = vadd.f32 %v899, %v900
    %v902 = vrot.slane %v901, 1
    %v903 = vadd.f32 %v901, %v902
    %s904 = vtos %v903
    %v905 = vstv %s904
    %v906 = vrcp.pop 3.0
    %v907 = vmul.f32 %v905, %v906
    %vm908 = vcmask 0
    %909 = vst.msk [vmem:[#allocation4] sm:$0x1] %vm908, %v907
    %v910 = vlaneseq
    %v911 = vand.u32 %v910, 127
    %v912 = vcvt.s32.f32 %v911
    %v913 = vsel %vm858, %v879, -inf
    %914 = vmax.xlane.f32.xlu0 %v913
    %v915 = vpop.xlane.xlu0 %914
    %v916 = vsel %vm858, %v880, -inf
    %917 = vmax.xlane.f32.xlu0 %v916
    %v918 = vpop.xlane.xlu0 %917
    %vm919 = vcmp.ge.f32.partialorder %v879, %v915
    %vm920 = vcmp.ge.f32.partialorder %v880, %v918
    %v921 = vsel %vm919, %v912, 3.0
    %v922 = vsel %vm920, %v912, 3.0
    %v923 = vsel %vm858, %v921, inf
    %924 = vmin.xlane.f32.xlu0 %v923
    %v925 = vpop.xlane.xlu0 %924
    %v926 = vsel %vm858, %v922, inf
    %927 = vmin.xlane.f32.xlu0 %v926
    %v928 = vpop.xlane.xlu0 %927
    %v929 = vld [vmem:[%s10] sm:$0xff]
    %v930 = vld [vmem:[%s10 + $0x8] sm:$0xf]
    %v931 = vld [vmem:[%s10 + $0xc] sm:$0xff]
    %v932 = vld [vmem:[%s10 + $0x14] sm:$0xf]
    %v933 = vld [vmem:[%s10 + $0x18] sm:$0xff]
    %v934 = vld [vmem:[%s10 + $0x20] sm:$0xf]
    %v935 = vld [vmem:[%s10 + $0x24] sm:$0xff]
    %v936 = vld [vmem:[%s10 + $0x2c] sm:$0xf]
    %v945 = vunpack.c.l.b16 %v929
    %v946 = vunpack.c.h.b16 %v929
    %v947 = vunpack.c.l.b16 %v930
    %v948 = vunpack.c.l.b16 %v931
    %v949 = vunpack.c.h.b16 %v931
    %v950 = vunpack.c.l.b16 %v932
    %v951 = vunpack.c.l.b16 %v933
    %v952 = vunpack.c.h.b16 %v933
    %v953 = vunpack.c.l.b16 %v934
    %v954 = vunpack.c.l.b16 %v935
    %v955 = vunpack.c.h.b16 %v935
    %v956 = vunpack.c.l.b16 %v936
    %v957 = vpack.c.b16 %v948, %v945
    %v958 = vpack.c.b16 %v949, %v946
    %v959 = vpack.c.b16 %v950, %v947
    %v960 = vpack.c.b16 %v954, %v951
    %v961 = vpack.c.b16 %v955, %v952
    %v962 = vpack.c.b16 %v956, %v953
    %969 = vmatprep.subr.bf16.mxu0 0
    %970 = vmatpush1.bf16.msra.mxu0 0
    %971 = vmatprep.subr.bf16.mxu0 0
    %972 = vmatpush1.bf16.msra.mxu0 0
    %973 = vmatprep.subr.bf16.mxu0 0
    %974 = vmatpush1.bf16.msra.mxu0 0
    %975 = vmatprep.subr.bf16.mxu0 0
    %976 = vmatpush1.bf16.msra.mxu0 0
    %977 = vmatprep.subr.bf16.mxu0 0
    %978 = vmatpush1.bf16.msra.mxu0 0
    %979 = vmatprep.subr.bf16.mxu0 0
    %980 = vmatpush1.bf16.msra.mxu0 0
    %981 = vmatprep.subr.bf16.mxu0 %v961
    %982 = vmatpush1.bf16.msra.mxu0 %v960
    %983 = vmatprep.subr.bf16.mxu0 %v958
    %984 = vmatpush1.bf16.msra.mxu0 %v957
    %985 = vmatprep.subr.bf16.mxu0 0
    %986 = vmatpush2.bf16.msra.mxu0 0
    %987 = vmatprep.subr.bf16.mxu0 0
    %988 = vmatpush2.bf16.msra.mxu0 0
    %989 = vmatprep.subr.bf16.mxu0 0
    %990 = vmatpush2.bf16.msra.mxu0 0
    %991 = vmatprep.subr.bf16.mxu0 0
    %992 = vmatpush2.bf16.msra.mxu0 0
    %993 = vmatprep.subr.bf16.mxu0 0
    %994 = vmatpush2.bf16.msra.mxu0 0
    %995 = vmatprep.subr.bf16.mxu0 0
    %996 = vmatpush2.bf16.msra.mxu0 0
    %997 = vmatprep.subr.bf16.mxu0 0
    %998 = vmatpush2.bf16.msra.mxu0 0
    %999 = vmatprep.subr.bf16.mxu0 0
    %1000 = vmatpush2.bf16.msra.mxu0 0
    %1001 = vmatprep.mubr.bf16.mxu0 0
    %1002 = vmatmul.mubr.bf16.gmra.mxu0 %v815
    %v1003 = vpop.f32.mrf.mxu0
    %v1004 = vadd.f32 0.0, %v1003
    %v1005 = vpop.f32.mrf.mxu0
    %v1006 = vadd.f32 0.0, %v1005
    %v1007 = vpop.f32.mrf.mxu0
    %v1008 = vadd.f32 0.0, %v1007
    %v1009 = vpop.f32.mrf.mxu0
    %v1010 = vadd.f32 0.0, %v1009
    %1011 = vdwg.mxu0
    %1012 = vmatprep.subr.bf16.mxu0 0
    %1013 = vmatpush1.bf16.msra.mxu0 0
    %1014 = vmatprep.subr.bf16.mxu0 0
    %1015 = vmatpush1.bf16.msra.mxu0 0
    %1016 = vmatprep.subr.bf16.mxu0 0
    %1017 = vmatpush1.bf16.msra.mxu0 0
    %1018 = vmatprep.subr.bf16.mxu0 0
    %1019 = vmatpush1.bf16.msra.mxu0 0
    %1020 = vmatprep.subr.bf16.mxu0 0
    %1021 = vmatpush1.bf16.msra.mxu0 0
    %1022 = vmatprep.subr.bf16.mxu0 0
    %1023 = vmatpush1.bf16.msra.mxu0 0
    %1024 = vmatprep.subr.bf16.mxu0 0
    %1025 = vmatpush1.bf16.msra.mxu0 %v962
    %1026 = vmatprep.subr.bf16.mxu0 0
    %1027 = vmatpush1.bf16.msra.mxu0 %v959
    %1028 = vmatprep.subr.bf16.mxu0 0
    %1029 = vmatpush2.bf16.msra.mxu0 0
    %1030 = vmatprep.subr.bf16.mxu0 0
    %1031 = vmatpush2.bf16.msra.mxu0 0
    %1032 = vmatprep.subr.bf16.mxu0 0
    %1033 = vmatpush2.bf16.msra.mxu0 0
    %1034 = vmatprep.subr.bf16.mxu0 0
    %1035 = vmatpush2.bf16.msra.mxu0 0
    %1036 = vmatprep.subr.bf16.mxu0 0
    %1037 = vmatpush2.bf16.msra.mxu0 0
    %1038 = vmatprep.subr.bf16.mxu0 0
    %1039 = vmatpush2.bf16.msra.mxu0 0
    %1040 = vmatprep.subr.bf16.mxu0 0
    %1041 = vmatpush2.bf16.msra.mxu0 0
    %1042 = vmatprep.subr.bf16.mxu0 0
    %1043 = vmatpush2.bf16.msra.mxu0 0
    %1044 = vmatprep.mubr.bf16.mxu0 0
    %1045 = vmatmul.mubr.bf16.gmra.mxu0 %v815
    %v1046 = vpop.f32.mrf.mxu0
    %v1047 = vadd.f32 0.0, %v1046
    %v1048 = vpop.f32.mrf.mxu0
    %v1049 = vpop.f32.mrf.mxu0
    %v1050 = vadd.f32 0.0, %v1049
    %v1051 = vpop.f32.mrf.mxu0
    %1052 = vdwg.mxu0
    %v1053 = vxor.u32 %v1004, 2147483648
    %v1054 = vxor.u32 %v1006, 2147483648
    %v1055 = vxor.u32 %v1008, 2147483648
    %v1056 = vxor.u32 %v1010, 2147483648
    %v1057 = vmul.f32 %v1053, 1.442695
    %v1058 = vpow.pop %v1057
    %v1059 = vmul.f32 %v1054, 1.442695
    %v1060 = vpow.pop %v1059
    %v1061 = vmul.f32 %v1055, 1.442695
    %v1062 = vpow.pop %v1061
    %v1063 = vmul.f32 %v1056, 1.442695
    %v1064 = vpow.pop %v1063
    %v1065 = vadd.f32 %v1058, 1.0
    %v1066 = vadd.f32 %v1060, 1.0
    %v1067 = vadd.f32 %v1062, 1.0
    %v1068 = vadd.f32 %v1064, 1.0
    %v1069 = vrcp.pop %v1065
    %v1070 = vmul.f32 1.0, %v1069
    %v1071 = vrcp.pop %v1066
    %v1072 = vmul.f32 1.0, %v1071
    %v1073 = vrcp.pop %v1067
    %v1074 = vmul.f32 1.0, %v1073
    %v1075 = vrcp.pop %v1068
    %v1076 = vmul.f32 1.0, %v1075
    %v1077 = vmul.f32 %v1004, %v1070
    %v1078 = vmul.f32 %v1006, %v1072
    %v1079 = vmul.f32 %v1008, %v1074
    %v1080 = vmul.f32 %v1010, %v1076
    %1085 = vrot.lane.b32.xlu0 %v1006, 64
    %v1086 = vpop.permute.xlu0 %1085
    %1087 = vrot.lane.b32.xlu0 %v1047, 64
    %v1088 = vpop.permute.xlu0 %1087
    %1089 = vrot.lane.b32.xlu0 %v1010, 64
    %v1090 = vpop.permute.xlu0 %1089
    %1091 = vrot.lane.b32.xlu0 %v1050, 64
    %v1092 = vpop.permute.xlu0 %1091
    %v1093 = vsel %vm493, %v1086, %v1088
    %v1094 = vsel %vm493, %v1090, %v1092
    %v1099 = vmul.f32 %v1077, %v1093
    %v1100 = vmul.f32 %v1078, %v1088
    %v1101 = vmul.f32 %v1079, %v1094
    %v1102 = vmul.f32 %v1080, %v1092
    %v1103 = vld [vmem:[%s12] sm:$0x3]
    %v1105 = vlaneseq
    %v1106 = vshrl.u32 %v1105, 7
    %v1107 = vsub.s32 0, %v1106
    %v1108 = vrot.slane %v1103, %v1107
    %v1109 = vlaneseq
    %v1110 = vshrl.u32 %v1109, 7
    %v1111 = vsub.s32 1, %v1110
    %v1112 = vrot.slane %v1103, %v1111
    %vm1115 = vcmp.eq.f32.partialorder %v1108, %v925
    %vm1116 = vcmp.eq.f32.partialorder %v1112, %v925
    %vm1117 = vcmp.eq.f32.partialorder %v1108, %v928
    %vm1118 = vcmp.eq.f32.partialorder %v1112, %v928
    %v1119 = vsel %vm1115, %v1099, 0.0
    %v1120 = vsel %vm1116, %v1100, 0.0
    %v1121 = vsel %vm1117, %v1101, 0.0
    %v1122 = vsel %vm1118, %v1102, 0.0
    %v1123 = vpack.c.bf16 %v1121, %v1119
    %v1124 = vpack.c.bf16 %v1122, %v1120
    %v1125 = vld [vmem:[%s11] sm:$0xf]
    %v1126 = vld [vmem:[%s11 + $0x4] sm:$0xf]
    %v1127 = vld [vmem:[%s11 + $0x8] sm:$0xf]
    %v1128 = vld [vmem:[%s11 + $0xc] sm:$0xf]
    %v1129 = vld [vmem:[%s11 + $0x10] sm:$0xf]
    %v1130 = vld [vmem:[%s11 + $0x14] sm:$0xf]
    %v1131 = vld [vmem:[%s11 + $0x18] sm:$0xf]
    %v1132 = vld [vmem:[%s11 + $0x1c] sm:$0xf]
    %v1133 = vld [vmem:[%s11 + $0x20] sm:$0xf]
    %v1134 = vld [vmem:[%s11 + $0x24] sm:$0xf]
    %v1135 = vld [vmem:[%s11 + $0x28] sm:$0xf]
    %v1136 = vld [vmem:[%s11 + $0x2c] sm:$0xf]
    %v1137 = vld [vmem:[%s11 + $0x30] sm:$0xf]
    %v1138 = vld [vmem:[%s11 + $0x34] sm:$0xf]
    %v1139 = vld [vmem:[%s11 + $0x38] sm:$0xf]
    %v1140 = vld [vmem:[%s11 + $0x3c] sm:$0xf]
    %v1141 = vld [vmem:[%s11 + $0x40] sm:$0xf]
    %v1142 = vld [vmem:[%s11 + $0x44] sm:$0xf]
    %v1143 = vld [vmem:[%s11 + $0x48] sm:$0xf]
    %v1144 = vld [vmem:[%s11 + $0x4c] sm:$0xf]
    %v1145 = vld [vmem:[%s11 + $0x50] sm:$0xf]
    %v1146 = vld [vmem:[%s11 + $0x54] sm:$0xf]
    %v1147 = vld [vmem:[%s11 + $0x58] sm:$0xf]
    %v1148 = vld [vmem:[%s11 + $0x5c] sm:$0xf]
    %v1173 = vunpack.c.l.b16 %v1125
    %v1174 = vunpack.c.l.b16 %v1126
    %v1175 = vunpack.c.l.b16 %v1127
    %v1176 = vunpack.c.l.b16 %v1128
    %v1177 = vunpack.c.l.b16 %v1129
    %v1178 = vunpack.c.l.b16 %v1130
    %v1179 = vunpack.c.l.b16 %v1131
    %v1180 = vunpack.c.l.b16 %v1132
    %v1181 = vunpack.c.l.b16 %v1133
    %v1182 = vunpack.c.l.b16 %v1134
    %v1183 = vunpack.c.l.b16 %v1135
    %v1184 = vunpack.c.l.b16 %v1136
    %v1185 = vunpack.c.l.b16 %v1137
    %v1186 = vunpack.c.l.b16 %v1138
    %v1187 = vunpack.c.l.b16 %v1139
    %v1188 = vunpack.c.l.b16 %v1140
    %v1189 = vunpack.c.l.b16 %v1141
    %v1190 = vunpack.c.l.b16 %v1142
    %v1191 = vunpack.c.l.b16 %v1143
    %v1192 = vunpack.c.l.b16 %v1144
    %v1193 = vunpack.c.l.b16 %v1145
    %v1194 = vunpack.c.l.b16 %v1146
    %v1195 = vunpack.c.l.b16 %v1147
    %v1196 = vunpack.c.l.b16 %v1148
    %v1197 = vpack.c.b16 %v1174, %v1173
    %v1198 = vpack.c.b16 %v1176, %v1175
    %v1199 = vpack.c.b16 %v1178, %v1177
    %v1200 = vpack.c.b16 %v1180, %v1179
    %v1201 = vpack.c.b16 %v1182, %v1181
    %v1202 = vpack.c.b16 %v1184, %v1183
    %v1203 = vpack.c.b16 %v1186, %v1185
    %v1204 = vpack.c.b16 %v1188, %v1187
    %v1205 = vpack.c.b16 %v1190, %v1189
    %v1206 = vpack.c.b16 %v1192, %v1191
    %v1207 = vpack.c.b16 %v1194, %v1193
    %v1208 = vpack.c.b16 %v1196, %v1195
    %v1222 = vsel %vm493, %v1124, 0
    %1224 = vmatprep.subr.bf16.mxu0 0
    %1225 = vmatpush1.bf16.msra.mxu0 %v1204
    %1226 = vmatprep.subr.bf16.mxu0 0
    %1227 = vmatpush1.bf16.msra.mxu0 %v1203
    %1228 = vmatprep.subr.bf16.mxu0 0
    %1229 = vmatpush1.bf16.msra.mxu0 %v1202
    %1230 = vmatprep.subr.bf16.mxu0 0
    %1231 = vmatpush1.bf16.msra.mxu0 %v1201
    %1232 = vmatprep.subr.bf16.mxu0 0
    %1233 = vmatpush1.bf16.msra.mxu0 %v1200
    %1234 = vmatprep.subr.bf16.mxu0 0
    %1235 = vmatpush1.bf16.msra.mxu0 %v1199
    %1236 = vmatprep.subr.bf16.mxu0 0
    %1237 = vmatpush1.bf16.msra.mxu0 %v1198
    %1238 = vmatprep.subr.bf16.mxu0 0
    %1239 = vmatpush1.bf16.msra.mxu0 %v1197
    %1240 = vmatprep.subr.bf16.mxu0 0
    %1241 = vmatpush2.bf16.msra.mxu0 0
    %1242 = vmatprep.subr.bf16.mxu0 0
    %1243 = vmatpush2.bf16.msra.mxu0 0
    %1244 = vmatprep.subr.bf16.mxu0 0
    %1245 = vmatpush2.bf16.msra.mxu0 0
    %1246 = vmatprep.subr.bf16.mxu0 0
    %1247 = vmatpush2.bf16.msra.mxu0 0
    %1248 = vmatprep.subr.bf16.mxu0 0
    %1249 = vmatpush2.bf16.msra.mxu0 %v1208
    %1250 = vmatprep.subr.bf16.mxu0 0
    %1251 = vmatpush2.bf16.msra.mxu0 %v1207
    %1252 = vmatprep.subr.bf16.mxu0 0
    %1253 = vmatpush2.bf16.msra.mxu0 %v1206
    %1254 = vmatprep.subr.bf16.mxu0 0
    %1255 = vmatpush2.bf16.msra.mxu0 %v1205
    %1256 = vmatprep.mubr.bf16.mxu0 %v1222
    %1257 = vmatmul.mubr.bf16.gmra.mxu0 %v1123
    %v1258 = vpop.f32.mrf.mxu0
    %v1259 = vadd.f32 %v766, %v1258
    %v1260 = vpop.f32.mrf.mxu0
    %v1261 = vpop.f32.mrf.mxu0
    %v1262 = vadd.f32 %v769, %v1261
    %v1263 = vpop.f32.mrf.mxu0
    %1264 = vdwg.mxu0
    %1265 = vst.msk [vmem:[#allocation2] sm:$0xff] %vm53, %v1259
    %1266 = vst.msk [vmem:[#allocation2 + $0x8] sm:$0xff] %vm53, %v1262
    // Predicated region
    $region54: #{decoder_layer.1} parent=1 // pred_check
      _
    $region55: #{decoder_layer.1} parent=1 // pred_check_branch
      %1268 = sbr.rel (0) target = $region57
    $region56: #{decoder_layer.1} parent=1 // pred_region
      %s1270 = ssub.s32 256, 256
      %1271 = vsyncadd [#allocation3], %s1270
      %s1272 = sshll.u32 [#allocation2], 4
      %s1273 = int_to_ptr.vmem [resolvable:$true] %s1272
      %1278 = dma.vmem_to_hbm [thread:$0]  %s1273, 256, %s13, [#allocation3], 128, 128, 8
    $region57: #{decoder_layer.1} parent=1 // pred_fallthru
      _
    // Predicated region
    $region58: #{decoder_layer.1} parent=1 // pred_check
      _
    $region59: #{decoder_layer.1} parent=1 // pred_check_branch
      %1280 = sbr.rel (0) target = $region61
    $region60: #{decoder_layer.1} parent=1 // pred_region
      %s1282 = ssub.s32 16, 16
      %1283 = vsyncadd [#allocation5], %s1282
      %s1285 = sshll.u32 [#allocation4], 4
      %s1286 = int_to_ptr.vmem [resolvable:$true] %s1285
      %1288 = dma.vmem_to_hbm [thread:$0]  %s1286, 16, %s14, [#allocation5]
    $region61: #{decoder_layer.1} parent=1 // pred_fallthru
      _
    // Predicated region
    $region62: #{decoder_layer.1} parent=1 // pred_check
      _
    $region63: #{decoder_layer.1} parent=1 // pred_check_branch
      %1290 = sbr.rel (0) target = $region65
    $region64: #{decoder_layer.1} parent=1 // pred_region
      %1291 = dma.done [#allocation3], 256
    $region65: #{decoder_layer.1} parent=1 // pred_fallthru
      _
    // Predicated region
    $region66: #{decoder_layer.1} parent=1 // pred_check
      _
    $region67: #{decoder_layer.1} parent=1 // pred_check_branch
      %1293 = sbr.rel (0) target = $region69
    $region68: #{decoder_layer.1} parent=1 // pred_region
      %1294 = dma.done [#allocation5], 16
    $region69: #{decoder_layer.1} parent=1 // pred_fallthru
      _
    %1295 = vsyncpa [#allocation3], 1
    %1296 = vsyncpa [#allocation5], 1

</llo_original>
